<compile_context>
chip_gen: v6e
topology: v6e:2x2x1
jax: 0.10.0
libtpu: 0.0.40
codegen_flags: <defaults>
</compile_context>

<pallas_src>
import jax
import jax.numpy as jnp
import numpy as np
from jax.experimental import pallas as pl
from jax.experimental.pallas import tpu as pltpu

# ---- model dims (small, shape-consistent surrogate for the real 15574-feature VAE) ----
NUM_FEATURES = 512      # stands in for 15574 (kept small + 128-aligned for the demo)
ENC_HIDDEN   = 256      # VAE encoder hidden width (assumed)
LATENT       = 128      # encode_mu output width  (required by CoxMLP(128, ...))
COX_HIDDEN   = 100      # logical CoxMLP hidden width (nn.Linear(128, 100))
COX_PAD      = 128      # lane-padded hidden width used inside the kernel
OUT_SUBLANES = 8        # sublane depth of the lane-major risk slab


def _vaecox_kernel(x_ref,
                   w_enc_ref, b_enc_ref,
                   w_mu_ref,  b_mu_ref,
                   w_fc1_ref, b_fc1_ref,
                   w_fc2_ref, b_fc2_ref,
                   out_ref, mu_ref):
    # x arrives f32; cast to bf16 in-kernel (no wrapper-side HBM cast pass).
    x = x_ref[...].astype(jnp.bfloat16)                               # (TB, F)

    # vae.encode: Linear + ReLU  (bf16 MXU operands, f32 accumulation / epilogue)
    h = jnp.dot(x, w_enc_ref[...], preferred_element_type=jnp.float32)
    h = jnp.maximum(h + b_enc_ref[...], 0.0)                          # (TB, ENC_HIDDEN)

    # vae.encode_mu: Linear -> latent
    mu = jnp.dot(h.astype(jnp.bfloat16), w_mu_ref[...],
                 preferred_element_type=jnp.float32)
    mu = mu + b_mu_ref[...]                                           # (TB, LATENT)

    # cox.fc1 + ReLU  (dropout is identity in eval mode); hidden zero-padded 100->128
    c = jnp.dot(mu.astype(jnp.bfloat16), w_fc1_ref[...],
                preferred_element_type=jnp.float32)
    c = jnp.maximum(c + b_fc1_ref[...], 0.0)                          # (TB, COX_PAD)

    # cox.fc2 (N=1): XLU transpose + VPU multiply + sublane reduction so the risk is
    # produced lane-major (1, TB).  Padded weight rows are zero, so it's exact.
    ct = jnp.transpose(c)                                             # (COX_PAD, TB)
    r = jnp.sum(ct * w_fc2_ref[...], axis=0, keepdims=True)           # (1, TB)
    r = r + b_fc2_ref[0, 0]                                           # SMEM scalar bias

    # Lane-dense, lane-major risk slab: 8 sublanes x TB lanes (4 KiB/tile vs 64 KiB
    # for a (TB, 128) broadcast slab).  Wrapper reads sublane 0.
    out_ref[...] = jnp.broadcast_to(r, out_ref.shape).astype(out_ref.dtype)
    mu_ref[...] = mu.astype(mu_ref.dtype)


def prepare_params(params):
    """One-time cast/pad of the weights.  Call once, reuse across forward calls."""
    w_enc, b_enc, w_mu, b_mu, w_fc1, b_fc1, w_fc2, b_fc2 = params
    pad = COX_PAD - COX_HIDDEN
    return (
        w_enc.astype(jnp.bfloat16),                                         # (F, ENC_HIDDEN)
        b_enc.astype(jnp.float32),                                          # (1, ENC_HIDDEN)
        w_mu.astype(jnp.bfloat16),                                          # (ENC_HIDDEN, LATENT)
        b_mu.astype(jnp.float32),                                           # (1, LATENT)
        jnp.pad(w_fc1, ((0, 0), (0, pad))).astype(jnp.bfloat16),            # (LATENT, COX_PAD)
        jnp.pad(b_fc1, ((0, 0), (0, pad))).astype(jnp.float32),             # (1, COX_PAD)
        jnp.pad(w_fc2.reshape(COX_HIDDEN, 1), ((0, pad), (0, 0))).astype(jnp.float32),  # (COX_PAD, 1)
        b_fc2.reshape(1, 1).astype(jnp.float32),                            # (1, 1) -> SMEM
    )


def vaecox_forward(x, prepared_params, *, max_batch_tile=256):
    """x: [B, NUM_FEATURES] f32.  Returns (out [B,1] f32, mu [B,LATENT] f32)."""
    B, F = x.shape
    assert F == NUM_FEATURES

    (w_enc_b, b_enc, w_mu_b, b_mu,
     w_fc1_b, b_fc1_p, w_fc2_col, b_fc2_s) = prepared_params

    # 256-row tiles fill the v6e/v7x 256-wide MXU M-dim; below B=512 keep 128 so
    # v7x's two TensorCores both get a "parallel" grid step.  v5e: pass 128.
    tile = min(max_batch_tile, 256 if B >= 512 else 128)
    b_pad = pl.cdiv(B, tile) * tile
    if b_pad != B:
        x = jnp.pad(x, ((0, b_pad - B), (0, 0)))     # padded rows sliced off below

    def resident(arr):                                # fetched once, single-buffered
        return pl.BlockSpec(arr.shape, lambda i: (0,) * arr.ndim,
                            pipeline_mode=pl.Buffered(1))

    flops = 2 * b_pad * (NUM_FEATURES * ENC_HIDDEN + ENC_HIDDEN * LATENT
                         + LATENT * COX_PAD + COX_PAD)
    bytes_accessed = (
        x.size * 4
        + (w_enc_b.size + w_mu_b.size + w_fc1_b.size) * 2
        + (b_enc.size + b_mu.size + b_fc1_p.size + w_fc2_col.size + 1) * 4
        + (OUT_SUBLANES * b_pad + b_pad * LATENT) * 4
    )

    out_slab, mu = pl.pallas_call(
        _vaecox_kernel,
        out_shape=(
            jax.ShapeDtypeStruct((OUT_SUBLANES, b_pad), jnp.float32),
            jax.ShapeDtypeStruct((b_pad, LATENT), jnp.float32),
        ),
        grid_spec=pltpu.PrefetchScalarGridSpec(
            num_scalar_prefetch=0,
            grid=(b_pad // tile,),
            in_specs=[
                pl.BlockSpec((tile, NUM_FEATURES), lambda i: (i, 0)),   # x streams
                resident(w_enc_b), resident(b_enc),
                resident(w_mu_b),  resident(b_mu),
                resident(w_fc1_b), resident(b_fc1_p),
                resident(w_fc2_col),
                pl.BlockSpec(memory_space=pltpu.MemorySpace.SMEM),      # b_fc2 scalar
            ],
            out_specs=[
                pl.BlockSpec((OUT_SUBLANES, tile), lambda i: (0, i)),   # lane-major risk
                pl.BlockSpec((tile, LATENT), lambda i: (i, 0)),
            ],
        ),
        compiler_params=pltpu.CompilerParams(
            dimension_semantics=("parallel",),
            vmem_limit_bytes=32 * 1024 * 1024,
        ),
        cost_estimate=pl.CostEstimate(
            flops=flops, transcendentals=0, bytes_accessed=bytes_accessed),
    )(x, w_enc_b, b_enc, w_mu_b, b_mu, w_fc1_b, b_fc1_p, w_fc2_col, b_fc2_s)

    out = out_slab[0, :B].reshape(B, 1)   # sublane 0 holds the risk, column j = row j
    return out, mu[:B]


def init_params(key):
    """Deterministic xavier-normal-ish init.  Weights stored as [in, out], f32."""
    ks = jax.random.split(key, 8)

    def xavier(k, fan_in, fan_out):
        std = np.sqrt(2.0 / (fan_in + fan_out))
        return jax.random.normal(k, (fan_in, fan_out), jnp.float32) * std

    w_enc = xavier(ks[0], NUM_FEATURES, ENC_HIDDEN)
    b_enc = jax.random.normal(ks[1], (1, ENC_HIDDEN), jnp.float32) * 0.1
    w_mu  = xavier(ks[2], ENC_HIDDEN, LATENT)
    b_mu  = jax.random.normal(ks[3], (1, LATENT), jnp.float32) * 0.1
    w_fc1 = xavier(ks[4], LATENT, COX_HIDDEN)
    b_fc1 = jax.random.normal(ks[5], (1, COX_HIDDEN), jnp.float32) * 0.1
    w_fc2 = xavier(ks[6], COX_HIDDEN, 1)
    b_fc2 = jax.random.normal(ks[7], (1, 1), jnp.float32) * 0.1
    return (w_enc, b_enc, w_mu, b_mu, w_fc1, b_fc1, w_fc2, b_fc2)


def reference_forward(x, params):
    """Pure-JAX reference in the same numeric regime (bf16 operands, f32 accum)."""
    w_enc, b_enc, w_mu, b_mu, w_fc1, b_fc1, w_fc2, b_fc2 = params
    bf = jnp.bfloat16
    h = jnp.maximum(jnp.dot(x.astype(bf), w_enc.astype(bf),
                            preferred_element_type=jnp.float32) + b_enc, 0.0)
    mu = jnp.dot(h.astype(bf), w_mu.astype(bf),
                 preferred_element_type=jnp.float32) + b_mu
    c = jnp.maximum(jnp.dot(mu.astype(bf), w_fc1.astype(bf),
                            preferred_element_type=jnp.float32) + b_fc1, 0.0)
    o = jnp.sum(c * w_fc2.reshape(1, COX_HIDDEN), axis=-1, keepdims=True) + b_fc2.reshape(1, 1)
    return o, mu


if __name__ == "__main__":
    key = jax.random.PRNGKey(0)
    kx, kp = jax.random.split(key)

    # Non-multiple-of-128 batch on purpose: exercises host-side batch padding.
    B = 200
    x = jax.random.normal(kx, (B, NUM_FEATURES), jnp.float32)
    params = init_params(kp)
    prepped = prepare_params(params)          # one-time weight cast/pad, kept on device

    out, mu = vaecox_forward(x, prepped)
    jax.block_until_ready((out, mu))

    out_ref, mu_ref = reference_forward(x, params)
    assert out.shape == (B, 1) and mu.shape == (B, LATENT)
    np.testing.assert_allclose(np.asarray(out), np.asarray(out_ref), rtol=1e-2, atol=1e-2)
    np.testing.assert_allclose(np.asarray(mu), np.asarray(mu_ref), rtol=1e-2, atol=1e-2)

    print("KERNEL_OK")
</pallas_src>

<mosaic_0001>
module attributes {stable_mosaic.version = 11 : i64} {
  func.func @_vaecox_kernel(%arg0: i32, %arg1: memref<128x512xf32, #tpu.memory_space<vmem>>, %arg2: memref<512x256xbf16, #tpu.memory_space<vmem>>, %arg3: memref<1x256xf32, #tpu.memory_space<vmem>>, %arg4: memref<256x128xbf16, #tpu.memory_space<vmem>>, %arg5: memref<1x128xf32, #tpu.memory_space<vmem>>, %arg6: memref<128x128xbf16, #tpu.memory_space<vmem>>, %arg7: memref<1x128xf32, #tpu.memory_space<vmem>>, %arg8: memref<128x1xf32, #tpu.memory_space<vmem>>, %arg9: memref<1x1xf32, #tpu.memory_space<smem>>, %arg10: memref<8x128xf32, #tpu.memory_space<vmem>>, %arg11: memref<128x128xf32, #tpu.memory_space<vmem>>) attributes {dimension_semantics = [#tpu.dimension_semantics<parallel>], iteration_bounds = array<i64: 2>, scalar_prefetch = 0 : i64, scratch_operands = 0 : i64, tpu.core_type = #tpu.core_type<tc>, window_params = [{transform_indices = @transform_0, window_bounds = array<i64: 128, 512>}, {pipeline_mode = #tpu.pipeline_mode<synchronous>, transform_indices = @transform_1, window_bounds = array<i64: 512, 256>}, {pipeline_mode = #tpu.pipeline_mode<synchronous>, transform_indices = @transform_2, window_bounds = array<i64: 1, 256>}, {pipeline_mode = #tpu.pipeline_mode<synchronous>, transform_indices = @transform_3, window_bounds = array<i64: 256, 128>}, {pipeline_mode = #tpu.pipeline_mode<synchronous>, transform_indices = @transform_4, window_bounds = array<i64: 1, 128>}, {pipeline_mode = #tpu.pipeline_mode<synchronous>, transform_indices = @transform_5, window_bounds = array<i64: 128, 128>}, {pipeline_mode = #tpu.pipeline_mode<synchronous>, transform_indices = @transform_6, window_bounds = array<i64: 1, 128>}, {pipeline_mode = #tpu.pipeline_mode<synchronous>, transform_indices = @transform_7, window_bounds = array<i64: 128, 1>}, {transform_indices = @transform_8, window_bounds = array<i64: 1, 1>}, {transform_indices = @transform_9, window_bounds = array<i64: 8, 128>}, {transform_indices = @transform_10, window_bounds = array<i64: 128, 128>}]} {
    %c0 = arith.constant 0 : index
    %c0_0 = arith.constant 0 : index
    %0 = vector.load %arg1[%c0, %c0_0] : memref<128x512xf32, #tpu.memory_space<vmem>>, vector<128x512xf32>
    %1 = arith.truncf %0 : vector<128x512xf32> to vector<128x512xbf16>
    %c0_1 = arith.constant 0 : index
    %c0_2 = arith.constant 0 : index
    %2 = vector.load %arg2[%c0_1, %c0_2] : memref<512x256xbf16, #tpu.memory_space<vmem>>, vector<512x256xbf16>
    %cst = arith.constant dense<0.000000e+00> : vector<128x256xf32>
    %3 = tpu.matmul %1, %2, %cst {dimension_numbers = #tpu.dot_dimension_numbers<[1], [0], [0], [1], [0, 0, 1, 1], [], []>} : vector<128x512xbf16>, vector<512x256xbf16>, vector<128x256xf32> -> vector<128x256xf32>
    %c0_3 = arith.constant 0 : index
    %c0_4 = arith.constant 0 : index
    %4 = vector.load %arg3[%c0_3, %c0_4] : memref<1x256xf32, #tpu.memory_space<vmem>>, vector<1x256xf32>
    %5 = vector.broadcast %4 : vector<1x256xf32> to vector<128x256xf32>
    %6 = arith.addf %3, %5 : vector<128x256xf32>
    %cst_5 = arith.constant 0.000000e+00 : f32
    %7 = vector.broadcast %cst_5 : f32 to vector<128x256xf32>
    %8 = arith.maximumf %6, %7 : vector<128x256xf32>
    %9 = arith.truncf %8 : vector<128x256xf32> to vector<128x256xbf16>
    %c0_6 = arith.constant 0 : index
    %c0_7 = arith.constant 0 : index
    %10 = vector.load %arg4[%c0_6, %c0_7] : memref<256x128xbf16, #tpu.memory_space<vmem>>, vector<256x128xbf16>
    %cst_8 = arith.constant dense<0.000000e+00> : vector<128x128xf32>
    %11 = tpu.matmul %9, %10, %cst_8 {dimension_numbers = #tpu.dot_dimension_numbers<[1], [0], [0], [1], [0, 0, 1, 1], [], []>} : vector<128x256xbf16>, vector<256x128xbf16>, vector<128x128xf32> -> vector<128x128xf32>
    %c0_9 = arith.constant 0 : index
    %c0_10 = arith.constant 0 : index
    %12 = vector.load %arg5[%c0_9, %c0_10] : memref<1x128xf32, #tpu.memory_space<vmem>>, vector<1x128xf32>
    %13 = vector.broadcast %12 : vector<1x128xf32> to vector<128x128xf32>
    %14 = arith.addf %11, %13 : vector<128x128xf32>
    %15 = arith.truncf %14 : vector<128x128xf32> to vector<128x128xbf16>
    %c0_11 = arith.constant 0 : index
    %c0_12 = arith.constant 0 : index
    %16 = vector.load %arg6[%c0_11, %c0_12] : memref<128x128xbf16, #tpu.memory_space<vmem>>, vector<128x128xbf16>
    %cst_13 = arith.constant dense<0.000000e+00> : vector<128x128xf32>
    %17 = tpu.matmul %15, %16, %cst_13 {dimension_numbers = #tpu.dot_dimension_numbers<[1], [0], [0], [1], [0, 0, 1, 1], [], []>} : vector<128x128xbf16>, vector<128x128xbf16>, vector<128x128xf32> -> vector<128x128xf32>
    %c0_14 = arith.constant 0 : index
    %c0_15 = arith.constant 0 : index
    %18 = vector.load %arg7[%c0_14, %c0_15] : memref<1x128xf32, #tpu.memory_space<vmem>>, vector<1x128xf32>
    %19 = vector.broadcast %18 : vector<1x128xf32> to vector<128x128xf32>
    %20 = arith.addf %17, %19 : vector<128x128xf32>
    %cst_16 = arith.constant 0.000000e+00 : f32
    %21 = vector.broadcast %cst_16 : f32 to vector<128x128xf32>
    %22 = arith.maximumf %20, %21 : vector<128x128xf32>
    %23 = tpu.transpose %22, [1, 0] : vector<128x128xf32> -> vector<128x128xf32>
    %c0_17 = arith.constant 0 : index
    %c0_18 = arith.constant 0 : index
    %24 = vector.load %arg8[%c0_17, %c0_18] : memref<128x1xf32, #tpu.memory_space<vmem>>, vector<128x1xf32>
    %25 = vector.broadcast %24 : vector<128x1xf32> to vector<128x128xf32>
    %26 = arith.mulf %23, %25 : vector<128x128xf32>
    %cst_19 = arith.constant dense<0.000000e+00> : vector<128xf32>
    %27 = vector.multi_reduction <add>, %26, %cst_19 [0] : vector<128x128xf32> to vector<128xf32>
    %28 = vector.shape_cast %27 : vector<128xf32> to vector<1x128xf32>
    %c0_20 = arith.constant 0 : index
    %c0_21 = arith.constant 0 : index
    %29 = memref.load %arg9[%c0_20, %c0_21] : memref<1x1xf32, #tpu.memory_space<smem>>
    %30 = vector.broadcast %29 : f32 to vector<1x128xf32>
    %31 = arith.addf %28, %30 : vector<1x128xf32>
    %32 = vector.shape_cast %31 : vector<1x128xf32> to vector<1x128xf32>
    %33 = vector.broadcast %32 : vector<1x128xf32> to vector<8x128xf32>
    %c0_22 = arith.constant 0 : index
    %c0_23 = arith.constant 0 : index
    %34 = vector.load %arg10[%c0_22, %c0_23] : memref<8x128xf32, #tpu.memory_space<vmem>>, vector<8x128xf32>
    tpu.vector_store %arg10[%c0_22, %c0_23], %33 {strides = array<i32>} : memref<8x128xf32, #tpu.memory_space<vmem>>, vector<8x128xf32>,
    %c0_24 = arith.constant 0 : index
    %c0_25 = arith.constant 0 : index
    %35 = vector.load %arg11[%c0_24, %c0_25] : memref<128x128xf32, #tpu.memory_space<vmem>>, vector<128x128xf32>
    tpu.vector_store %arg11[%c0_24, %c0_25], %14 {strides = array<i32>} : memref<128x128xf32, #tpu.memory_space<vmem>>, vector<128x128xf32>,
    return
  }
  func.func @transform_0(%arg0: i32) -> (i32, i32) {
    %c0_i32 = arith.constant 0 : i32
    %c0_i32_0 = arith.constant 0 : i32
    return %arg0, %c0_i32 : i32, i32
  }
  func.func @transform_1(%arg0: i32) -> (i32, i32) {
    %c0_i32 = arith.constant 0 : i32
    %c0_i32_0 = arith.constant 0 : i32
    %c0_i32_1 = arith.constant 0 : i32
    return %c0_i32, %c0_i32_0 : i32, i32
  }
  func.func @transform_2(%arg0: i32) -> (i32, i32) {
    %c0_i32 = arith.constant 0 : i32
    %c0_i32_0 = arith.constant 0 : i32
    %c0_i32_1 = arith.constant 0 : i32
    return %c0_i32, %c0_i32_0 : i32, i32
  }
  func.func @transform_3(%arg0: i32) -> (i32, i32) {
    %c0_i32 = arith.constant 0 : i32
    %c0_i32_0 = arith.constant 0 : i32
    %c0_i32_1 = arith.constant 0 : i32
    return %c0_i32, %c0_i32_0 : i32, i32
  }
  func.func @transform_4(%arg0: i32) -> (i32, i32) {
    %c0_i32 = arith.constant 0 : i32
    %c0_i32_0 = arith.constant 0 : i32
    %c0_i32_1 = arith.constant 0 : i32
    return %c0_i32, %c0_i32_0 : i32, i32
  }
  func.func @transform_5(%arg0: i32) -> (i32, i32) {
    %c0_i32 = arith.constant 0 : i32
    %c0_i32_0 = arith.constant 0 : i32
    %c0_i32_1 = arith.constant 0 : i32
    return %c0_i32, %c0_i32_0 : i32, i32
  }
  func.func @transform_6(%arg0: i32) -> (i32, i32) {
    %c0_i32 = arith.constant 0 : i32
    %c0_i32_0 = arith.constant 0 : i32
    %c0_i32_1 = arith.constant 0 : i32
    return %c0_i32, %c0_i32_0 : i32, i32
  }
  func.func @transform_7(%arg0: i32) -> (i32, i32) {
    %c0_i32 = arith.constant 0 : i32
    %c0_i32_0 = arith.constant 0 : i32
    %c0_i32_1 = arith.constant 0 : i32
    return %c0_i32, %c0_i32_0 : i32, i32
  }
  func.func @transform_8(%arg0: i32) -> (i32, i32) {
    %c0_i32 = arith.constant 0 : i32
    %c0_i32_0 = arith.constant 0 : i32
    %c0_i32_1 = arith.constant 0 : i32
    return %c0_i32, %c0_i32_0 : i32, i32
  }
  func.func @transform_9(%arg0: i32) -> (i32, i32) {
    %c0_i32 = arith.constant 0 : i32
    %c0_i32_0 = arith.constant 0 : i32
    return %c0_i32, %arg0 : i32, i32
  }
  func.func @transform_10(%arg0: i32) -> (i32, i32) {
    %c0_i32 = arith.constant 0 : i32
    %c0_i32_0 = arith.constant 0 : i32
    return %arg0, %c0_i32 : i32, i32
  }
}

</mosaic_0001>

<llo_original>
// kernel: tpu_custom_call.1
$region0: #{tpu_custom_call.1}
  #allocation0 [shape = 'u32[]', space=smem, size = 0x4, offset = 0x4, fixed_abs, tag = 'smem constant byte address 0x4 - core index']
  #allocation1 [shape = 'u32[144,128]{1,0:T(1,128)}', space=vmem, size = 0x12000, scoped, tag = 'internal scratch']
  #allocation2 [shape = 'f32[1,1]{1,0:T(1,128)S(6)}', space=smem, size = 0x200, scoped, tag = 'scoped memory for tpu_custom_call.1']
  %s0 = inlined_call_operand.hbm [shape: f32[256,512], index: 0, kind: input, shape index: {}]
  %s1 = inlined_call_operand.hbm [shape: bf16[512,256], index: 1, kind: input, shape index: {}]
  %s2 = inlined_call_operand.vmem [shape: f32[1,256], index: 2, kind: input, shape index: {}]
  %s3 = inlined_call_operand.vmem [shape: bf16[256,128], index: 3, kind: input, shape index: {}]
  %s4 = inlined_call_operand.vmem [shape: f32[1,128], index: 4, kind: input, shape index: {}]
  %s5 = inlined_call_operand.hbm [shape: bf16[128,128], index: 5, kind: input, shape index: {}]
  %s6 = inlined_call_operand.vmem [shape: f32[1,128], index: 6, kind: input, shape index: {}]
  %s7 = inlined_call_operand.vmem [shape: f32[128,1], index: 7, kind: input, shape index: {}]
  %s8 = inlined_call_operand.<no memory space> [shape: f32[1,1], index: 8, kind: input, shape index: {}]
  %s9 = inlined_call_operand.hbm [shape: f32[8,256], index: 9, kind: output, shape index: {0}]
  %s10 = inlined_call_operand.hbm [shape: f32[256,128], index: 10, kind: output, shape index: {1}]
  %11 = xla_tuple %s9, %s10
  %s12 = sld [smem:[#allocation0]]
  $region89: #{tpu_custom_call.1} parent=0
    _
  %s14 = ssub.s32 1, %s12
  %s15 = scalar_select 0, %s14, %s12
  %16 = sst [smem:[#allocation2]] %s8
  $region1: #{tpu_custom_call.1} parent=0
    #allocation3 [shape = 'u8[524288]{0}', space=vmem, size = 0x80000, scoped, tag = 'input window, operand 0']
    #allocation4 [shape = 's32[2]{0}', space=sflag, size = 0x8, scoped, tag = 'scoped memory for tpu_custom_call.1']
    #allocation5 [shape = 's32[2]{0}', space=sflag, size = 0x8, scoped, tag = 'scoped memory for tpu_custom_call.1']
    #allocation6 [shape = 'u8[262144]{0}', space=vmem, size = 0x40000, scoped, tag = 'input window, operand 1, single buffered']
    #allocation7 [shape = 's32[1]{0}', space=sflag, size = 0x4, scoped, tag = 'scoped memory for tpu_custom_call.1']
    #allocation8 [shape = 'u8[32768]{0}', space=vmem, size = 0x8000, scoped, tag = 'input window, operand 5, single buffered']
    #allocation9 [shape = 'u8[8192]{0}', space=vmem, size = 0x2000, scoped, tag = 'output window, operand 0']
    #allocation10 [shape = 'u8[131072]{0}', space=vmem, size = 0x20000, scoped, tag = 'output window, operand 1']
    #allocation11 [shape = 's32[2]{0}', space=sflag, size = 0x8, scoped, tag = 'scoped memory for tpu_custom_call.1']
    %17 = vsyncpa [#allocation4], 0
    %s18 = scalar_lea.sflag [#allocation4], 1
    %19 = vsyncpa %s18, 0
    %20 = vsyncpa [#allocation7], 0
    %21 = vsyncpa [#allocation5], 0
    %s22 = scalar_lea.sflag [#allocation5], 1
    %23 = vsyncpa %s22, 0
    %24 = vsyncpa [#allocation11], 0
    %s25 = scalar_lea.sflag [#allocation11], 1
    %26 = vsyncpa %s25, 0
    loop: start=0, step=1, limit=4
    $region2: #{tpu_custom_call.1} parent=1 // loop_pre_header
      _
    $region3: #{tpu_custom_call.1} parent=1 // loop_header
      %s28 = sphi 0, %s32
      %p29 = scmp.ge.s32.totalorder %s28, 4
      %s38 = sphi 0, %s40
      %s41 = sphi 0, %s38
      %s42 = sphi 0, %s41
      %s58 = sphi 0, %s42
      %s62 = sphi 0, %s62
      %s64 = sphi 0, %s62
      %s65 = sphi 0, %s64
      %s79 = sphi 0, %s65
      %s83 = sphi 0, %s83
      %s85 = sphi 0, %s83
      %s86 = sphi 0, %s85
      %s100 = sphi 0, %s86
      %s104 = sphi 0, %s104
      %s106 = sphi 0, %s104
      %s107 = sphi 0, %s106
      %s121 = sphi 0, %s107
      %s125 = sphi 0, %s125
      %s127 = sphi 0, %s125
      %s128 = sphi 0, %s127
      %s142 = sphi 0, %s128
      %s146 = sphi 0, %s146
      %s148 = sphi 0, %s146
      %s149 = sphi 0, %s148
      %s163 = sphi 0, %s149
      %s167 = sphi 0, %s167
      %s169 = sphi 0, %s167
      %s170 = sphi 0, %s169
      %s184 = sphi 0, %s170
      %s188 = sphi 0, %s188
      %s190 = sphi 0, %s188
      %s191 = sphi 0, %s190
      %s205 = sphi 0, %s191
      %s209 = sphi 0, %s209
      %s211 = sphi 0, %s209
      %s212 = sphi 0, %s211
      %s226 = sphi 0, %s212
      %s232 = sphi 0, %s234
      %s235 = sphi 0, %s232
      %s236 = sphi 0, %s235
      %s252 = sphi 0, %s236
      %s258 = sphi 0, %s260
      %s261 = sphi 0, %s258
      %s262 = sphi 0, %s261
      %s278 = sphi 0, %s262
    $region4: #{tpu_custom_call.1} parent=1 // loop_header_branch
      %31 = sbr.rel (%p29) target = $region8
    $region5: #{tpu_custom_call.1} parent=1 // loop_body
      %s33 = ssub.s32 %s28, 1
      %s34 = ssub.s32 %s28, 2
      %s35 = sadd.s32 %s28, 1
      %s36 = ssub.s32 %s28, %s35
      %p37 = scmp.eq.s32.totalorder %s36, 0
      %s39 = sadd.s32 %s38, 1
      %s40 = scalar_select %p37, %s38, %s39
      %p43 = pneg %p37
      %p44 = scmp.eq.s32.totalorder %s28, 1
      %p45 = por %p43, %p44
      %p46 = scmp.ne.s32.totalorder %s38, %s41
      %p47 = scmp.eq.s32.totalorder %s28, 0
      %p48 = por %p46, %p47
      %p49 = scmp.ne.s32.totalorder %s38, %s41
      %p50 = scmp.eq.s32.totalorder %s33, 1
      %p51 = por %p49, %p50
      %p52 = scmp.ne.s32.totalorder %s41, %s42
      %p53 = scmp.eq.s32.totalorder %s33, 0
      %p54 = por %p52, %p53
      %p55 = scmp.ne.s32.totalorder %s41, %s42
      %p56 = scmp.eq.s32.totalorder %s34, 1
      %p57 = por %p55, %p56
      %p59 = scmp.ne.s32.totalorder %s42, %s58
      %p60 = scmp.eq.s32.totalorder %s34, 0
      %p61 = por %p59, %p60
      %s63 = sadd.s32 %s62, 1
      %p66 = scmp.eq.s32.totalorder %s28, 1
      %p67 = scmp.ne.s32.totalorder %s62, %s64
      %p68 = scmp.eq.s32.totalorder %s28, 0
      %p69 = por %p67, %p68
      %p70 = scmp.ne.s32.totalorder %s62, %s64
      %p71 = scmp.eq.s32.totalorder %s33, 1
      %p72 = por %p70, %p71
      %p73 = scmp.ne.s32.totalorder %s64, %s65
      %p74 = scmp.eq.s32.totalorder %s33, 0
      %p75 = por %p73, %p74
      %p76 = scmp.ne.s32.totalorder %s64, %s65
      %p77 = scmp.eq.s32.totalorder %s34, 1
      %p78 = por %p76, %p77
      %p80 = scmp.ne.s32.totalorder %s65, %s79
      %p81 = scmp.eq.s32.totalorder %s34, 0
      %p82 = por %p80, %p81
      %s84 = sadd.s32 %s83, 1
      %p87 = scmp.eq.s32.totalorder %s28, 1
      %p88 = scmp.ne.s32.totalorder %s83, %s85
      %p89 = scmp.eq.s32.totalorder %s28, 0
      %p90 = por %p88, %p89
      %p91 = scmp.ne.s32.totalorder %s83, %s85
      %p92 = scmp.eq.s32.totalorder %s33, 1
      %p93 = por %p91, %p92
      %p94 = scmp.ne.s32.totalorder %s85, %s86
      %p95 = scmp.eq.s32.totalorder %s33, 0
      %p96 = por %p94, %p95
      %p97 = scmp.ne.s32.totalorder %s85, %s86
      %p98 = scmp.eq.s32.totalorder %s34, 1
      %p99 = por %p97, %p98
      %p101 = scmp.ne.s32.totalorder %s86, %s100
      %p102 = scmp.eq.s32.totalorder %s34, 0
      %p103 = por %p101, %p102
      %s105 = sadd.s32 %s104, 1
      %p108 = scmp.eq.s32.totalorder %s28, 1
      %p109 = scmp.ne.s32.totalorder %s104, %s106
      %p110 = scmp.eq.s32.totalorder %s28, 0
      %p111 = por %p109, %p110
      %p112 = scmp.ne.s32.totalorder %s104, %s106
      %p113 = scmp.eq.s32.totalorder %s33, 1
      %p114 = por %p112, %p113
      %p115 = scmp.ne.s32.totalorder %s106, %s107
      %p116 = scmp.eq.s32.totalorder %s33, 0
      %p117 = por %p115, %p116
      %p118 = scmp.ne.s32.totalorder %s106, %s107
      %p119 = scmp.eq.s32.totalorder %s34, 1
      %p120 = por %p118, %p119
      %p122 = scmp.ne.s32.totalorder %s107, %s121
      %p123 = scmp.eq.s32.totalorder %s34, 0
      %p124 = por %p122, %p123
      %s126 = sadd.s32 %s125, 1
      %p129 = scmp.eq.s32.totalorder %s28, 1
      %p130 = scmp.ne.s32.totalorder %s125, %s127
      %p131 = scmp.eq.s32.totalorder %s28, 0
      %p132 = por %p130, %p131
      %p133 = scmp.ne.s32.totalorder %s125, %s127
      %p134 = scmp.eq.s32.totalorder %s33, 1
      %p135 = por %p133, %p134
      %p136 = scmp.ne.s32.totalorder %s127, %s128
      %p137 = scmp.eq.s32.totalorder %s33, 0
      %p138 = por %p136, %p137
      %p139 = scmp.ne.s32.totalorder %s127, %s128
      %p140 = scmp.eq.s32.totalorder %s34, 1
      %p141 = por %p139, %p140
      %p143 = scmp.ne.s32.totalorder %s128, %s142
      %p144 = scmp.eq.s32.totalorder %s34, 0
      %p145 = por %p143, %p144
      %s147 = sadd.s32 %s146, 1
      %p150 = scmp.eq.s32.totalorder %s28, 1
      %p151 = scmp.ne.s32.totalorder %s146, %s148
      %p152 = scmp.eq.s32.totalorder %s28, 0
      %p153 = por %p151, %p152
      %p154 = scmp.ne.s32.totalorder %s146, %s148
      %p155 = scmp.eq.s32.totalorder %s33, 1
      %p156 = por %p154, %p155
      %p157 = scmp.ne.s32.totalorder %s148, %s149
      %p158 = scmp.eq.s32.totalorder %s33, 0
      %p159 = por %p157, %p158
      %p160 = scmp.ne.s32.totalorder %s148, %s149
      %p161 = scmp.eq.s32.totalorder %s34, 1
      %p162 = por %p160, %p161
      %p164 = scmp.ne.s32.totalorder %s149, %s163
      %p165 = scmp.eq.s32.totalorder %s34, 0
      %p166 = por %p164, %p165
      %s168 = sadd.s32 %s167, 1
      %p171 = scmp.eq.s32.totalorder %s28, 1
      %p172 = scmp.ne.s32.totalorder %s167, %s169
      %p173 = scmp.eq.s32.totalorder %s28, 0
      %p174 = por %p172, %p173
      %p175 = scmp.ne.s32.totalorder %s167, %s169
      %p176 = scmp.eq.s32.totalorder %s33, 1
      %p177 = por %p175, %p176
      %p178 = scmp.ne.s32.totalorder %s169, %s170
      %p179 = scmp.eq.s32.totalorder %s33, 0
      %p180 = por %p178, %p179
      %p181 = scmp.ne.s32.totalorder %s169, %s170
      %p182 = scmp.eq.s32.totalorder %s34, 1
      %p183 = por %p181, %p182
      %p185 = scmp.ne.s32.totalorder %s170, %s184
      %p186 = scmp.eq.s32.totalorder %s34, 0
      %p187 = por %p185, %p186
      %s189 = sadd.s32 %s188, 1
      %p192 = scmp.eq.s32.totalorder %s28, 1
      %p193 = scmp.ne.s32.totalorder %s188, %s190
      %p194 = scmp.eq.s32.totalorder %s28, 0
      %p195 = por %p193, %p194
      %p196 = scmp.ne.s32.totalorder %s188, %s190
      %p197 = scmp.eq.s32.totalorder %s33, 1
      %p198 = por %p196, %p197
      %p199 = scmp.ne.s32.totalorder %s190, %s191
      %p200 = scmp.eq.s32.totalorder %s33, 0
      %p201 = por %p199, %p200
      %p202 = scmp.ne.s32.totalorder %s190, %s191
      %p203 = scmp.eq.s32.totalorder %s34, 1
      %p204 = por %p202, %p203
      %p206 = scmp.ne.s32.totalorder %s191, %s205
      %p207 = scmp.eq.s32.totalorder %s34, 0
      %p208 = por %p206, %p207
      %s210 = sadd.s32 %s209, 1
      %p213 = scmp.eq.s32.totalorder %s28, 1
      %p214 = scmp.ne.s32.totalorder %s209, %s211
      %p215 = scmp.eq.s32.totalorder %s28, 0
      %p216 = por %p214, %p215
      %p217 = scmp.ne.s32.totalorder %s209, %s211
      %p218 = scmp.eq.s32.totalorder %s33, 1
      %p219 = por %p217, %p218
      %p220 = scmp.ne.s32.totalorder %s211, %s212
      %p221 = scmp.eq.s32.totalorder %s33, 0
      %p222 = por %p220, %p221
      %p223 = scmp.ne.s32.totalorder %s211, %s212
      %p224 = scmp.eq.s32.totalorder %s34, 1
      %p225 = por %p223, %p224
      %p227 = scmp.ne.s32.totalorder %s212, %s226
      %p228 = scmp.eq.s32.totalorder %s34, 0
      %p229 = por %p227, %p228
      %s230 = ssub.s32 %s28, %s35
      %p231 = scmp.eq.s32.totalorder %s230, 0
      %s233 = sadd.s32 %s232, 1
      %s234 = scalar_select %p231, %s232, %s233
      %p237 = pneg %p231
      %p238 = scmp.eq.s32.totalorder %s28, 1
      %p239 = por %p237, %p238
      %p240 = scmp.ne.s32.totalorder %s232, %s235
      %p241 = scmp.eq.s32.totalorder %s28, 0
      %p242 = por %p240, %p241
      %p243 = scmp.ne.s32.totalorder %s232, %s235
      %p244 = scmp.eq.s32.totalorder %s33, 1
      %p245 = por %p243, %p244
      %p246 = scmp.ne.s32.totalorder %s235, %s236
      %p247 = scmp.eq.s32.totalorder %s33, 0
      %p248 = por %p246, %p247
      %p249 = scmp.ne.s32.totalorder %s235, %s236
      %p250 = scmp.eq.s32.totalorder %s34, 1
      %p251 = por %p249, %p250
      %p253 = scmp.ne.s32.totalorder %s236, %s252
      %p254 = scmp.eq.s32.totalorder %s34, 0
      %p255 = por %p253, %p254
      %s256 = ssub.s32 %s28, %s35
      %p257 = scmp.eq.s32.totalorder %s256, 0
      %s259 = sadd.s32 %s258, 1
      %s260 = scalar_select %p257, %s258, %s259
      %p263 = pneg %p257
      %p264 = scmp.eq.s32.totalorder %s28, 1
      %p265 = por %p263, %p264
      %p266 = scmp.ne.s32.totalorder %s258, %s261
      %p267 = scmp.eq.s32.totalorder %s28, 0
      %p268 = por %p266, %p267
      %p269 = scmp.ne.s32.totalorder %s258, %s261
      %p270 = scmp.eq.s32.totalorder %s33, 1
      %p271 = por %p269, %p270
      %p272 = scmp.ne.s32.totalorder %s261, %s262
      %p273 = scmp.eq.s32.totalorder %s33, 0
      %p274 = por %p272, %p273
      %p275 = scmp.ne.s32.totalorder %s261, %s262
      %p276 = scmp.eq.s32.totalorder %s34, 1
      %p277 = por %p275, %p276
      %p279 = scmp.ne.s32.totalorder %s262, %s278
      %p280 = scmp.eq.s32.totalorder %s34, 0
      %p281 = por %p279, %p280
      %p282 = scmp.le.s32.totalorder 1, %s28
      %p283 = scmp.lt.s32.totalorder %s28, 3
      %p284 = pnand %p282, %p283
      %p285 = pneg %p284
      // Predicated region
      $region9: #{tpu_custom_call.1} parent=5 // pred_check
        _
      $region10: #{tpu_custom_call.1} parent=5 // pred_check_branch
        %287 = sbr.rel (%p284) target = $region12
      $region11: #{tpu_custom_call.1} parent=5 // pred_region
        %s288 = ssub.s32 %s28, 1
        // Predicated region
        $region13: #{tpu_custom_call.1} parent=11 // pred_check
          %p289 = pneg %p75
        $region14: #{tpu_custom_call.1} parent=11 // pred_check_branch
          %291 = sbr.rel (%p289) target = $region16
        $region15: #{tpu_custom_call.1} parent=11 // pred_region
          %s293 = ssub.s32 8192, 8192
          %294 = vsyncadd [#allocation7], %s293
          %s295 = sshll.u32 [#allocation6], 4
          %s296 = int_to_ptr.vmem [resolvable:$true] %s295
          %301 = dma.hbm_to_vmem [thread:$0]  %s1, 8192, %s296, [#allocation7], 128, 128, 8
        $region16: #{tpu_custom_call.1} parent=11 // pred_fallthru
          _
        // Predicated region
        $region17: #{tpu_custom_call.1} parent=11 // pred_check
          %p302 = pneg %p96
        $region18: #{tpu_custom_call.1} parent=11 // pred_check_branch
          %304 = sbr.rel (%p302) target = $region20
        $region19: #{tpu_custom_call.1} parent=11 // pred_region
          _
        $region20: #{tpu_custom_call.1} parent=11 // pred_fallthru
          _
        // Predicated region
        $region21: #{tpu_custom_call.1} parent=11 // pred_check
          %p305 = pneg %p117
        $region22: #{tpu_custom_call.1} parent=11 // pred_check_branch
          %307 = sbr.rel (%p305) target = $region24
        $region23: #{tpu_custom_call.1} parent=11 // pred_region
          _
        $region24: #{tpu_custom_call.1} parent=11 // pred_fallthru
          _
        // Predicated region
        $region25: #{tpu_custom_call.1} parent=11 // pred_check
          %p308 = pneg %p138
        $region26: #{tpu_custom_call.1} parent=11 // pred_check_branch
          %310 = sbr.rel (%p308) target = $region28
        $region27: #{tpu_custom_call.1} parent=11 // pred_region
          _
        $region28: #{tpu_custom_call.1} parent=11 // pred_fallthru
          _
        // Predicated region
        $region29: #{tpu_custom_call.1} parent=11 // pred_check
          %p311 = pneg %p159
        $region30: #{tpu_custom_call.1} parent=11 // pred_check_branch
          %313 = sbr.rel (%p311) target = $region32
        $region31: #{tpu_custom_call.1} parent=11 // pred_region
          %s315 = ssub.s32 1024, 1024
          %316 = vsyncadd [#allocation7], %s315
          %s317 = sshll.u32 [#allocation8], 4
          %s318 = int_to_ptr.vmem [resolvable:$true] %s317
          %323 = dma.hbm_to_vmem [thread:$0]  %s5, 1024, %s318, [#allocation7], 64, 64, 4
        $region32: #{tpu_custom_call.1} parent=11 // pred_fallthru
          _
        // Predicated region
        $region33: #{tpu_custom_call.1} parent=11 // pred_check
          %p324 = pneg %p180
        $region34: #{tpu_custom_call.1} parent=11 // pred_check_branch
          %326 = sbr.rel (%p324) target = $region36
        $region35: #{tpu_custom_call.1} parent=11 // pred_region
          _
        $region36: #{tpu_custom_call.1} parent=11 // pred_fallthru
          _
        // Predicated region
        $region37: #{tpu_custom_call.1} parent=11 // pred_check
          %p327 = pneg %p201
        $region38: #{tpu_custom_call.1} parent=11 // pred_check_branch
          %329 = sbr.rel (%p327) target = $region40
        $region39: #{tpu_custom_call.1} parent=11 // pred_region
          _
        $region40: #{tpu_custom_call.1} parent=11 // pred_fallthru
          _
        // Predicated region
        $region41: #{tpu_custom_call.1} parent=11 // pred_check
          %p330 = pneg %p222
        $region42: #{tpu_custom_call.1} parent=11 // pred_check_branch
          %332 = sbr.rel (%p330) target = $region44
        $region43: #{tpu_custom_call.1} parent=11 // pred_region
          _
        $region44: #{tpu_custom_call.1} parent=11 // pred_fallthru
          _
      $region12: #{tpu_custom_call.1} parent=5 // pred_fallthru
        _
      %p333 = scmp.lt.s32.totalorder %s28, 2
      // Predicated region
      $region45: #{tpu_custom_call.1} parent=5 // pred_check
        %p334 = pneg %p333
      $region46: #{tpu_custom_call.1} parent=5 // pred_check_branch
        %336 = sbr.rel (%p334) target = $region48
      $region47: #{tpu_custom_call.1} parent=5 // pred_region
        // Predicated region
        $region49: #{tpu_custom_call.1} parent=47 // pred_check
          %p337 = pneg %p48
        $region50: #{tpu_custom_call.1} parent=47 // pred_check_branch
          %339 = sbr.rel (%p337) target = $region52
        $region51: #{tpu_custom_call.1} parent=47 // pred_region
          %s340 = sand.u32 %s38, 1
          %s341 = scalar_lea.sflag [#allocation4], %s340
          %s342 = sand.u32 %s38, 1
          %s343 = smul.addr %s342, 512
          %s344 = scalar_lea.vmem [#allocation3], %s343
          %s345 = smul.u32 16, %s28
          %s347 = ssub.s32 8192, 8192
          %348 = vsyncadd %s341, %s347
          %s349 = smul.addr %s345, 4
          %s350 = smul.addr %s349, 128
          %s351 = scalar_lea.hbm %s0, %s350
          %s352 = sshll.u32 %s344, 4
          %s353 = int_to_ptr.vmem [resolvable:$true] %s352
          %358 = dma.hbm_to_vmem [thread:$0]  %s351, 8192, %s353, %s341, 512, 512, 32
        $region52: #{tpu_custom_call.1} parent=47 // pred_fallthru
          _
      $region48: #{tpu_custom_call.1} parent=5 // pred_fallthru
        _
      %p359 = scmp.le.s32.totalorder 1, %s28
      %p360 = scmp.lt.s32.totalorder %s28, 3
      %p361 = pnand %p359, %p360
      %p362 = pneg %p361
      // Predicated region
      $region53: #{tpu_custom_call.1} parent=5 // pred_check
        _
      $region54: #{tpu_custom_call.1} parent=5 // pred_check_branch
        %364 = sbr.rel (%p361) target = $region56
      $region55: #{tpu_custom_call.1} parent=5 // pred_region
        %s365 = ssub.s32 %s28, 1
        %s366 = sand.u32 %s41, 1
        %s367 = scalar_lea.sflag [#allocation4], %s366
        %s368 = sand.u32 %s41, 1
        %s369 = smul.addr %s368, 512
        %s370 = scalar_lea.vmem [#allocation3], %s369
        // Predicated region
        $region57: #{tpu_custom_call.1} parent=55 // pred_check
          %p371 = pneg %p54
        $region58: #{tpu_custom_call.1} parent=55 // pred_check_branch
          %373 = sbr.rel (%p371) target = $region60
        $region59: #{tpu_custom_call.1} parent=55 // pred_region
          %374 = dma.done %s367, 8192
        $region60: #{tpu_custom_call.1} parent=55 // pred_fallthru
          _
        // Predicated region
        $region61: #{tpu_custom_call.1} parent=55 // pred_check
          %p375 = pneg %p75
        $region62: #{tpu_custom_call.1} parent=55 // pred_check_branch
          %377 = sbr.rel (%p375) target = $region64
        $region63: #{tpu_custom_call.1} parent=55 // pred_region
          %378 = dma.done [#allocation7], 8192
        $region64: #{tpu_custom_call.1} parent=55 // pred_fallthru
          _
        // Predicated region
        $region65: #{tpu_custom_call.1} parent=55 // pred_check
          %p379 = pneg %p159
        $region66: #{tpu_custom_call.1} parent=55 // pred_check_branch
          %381 = sbr.rel (%p379) target = $region68
        $region67: #{tpu_custom_call.1} parent=55 // pred_region
          %382 = dma.done [#allocation7], 1024
        $region68: #{tpu_custom_call.1} parent=55 // pred_fallthru
          _
        %s383 = sand.u32 %s41, 1
        %s384 = scalar_lea.sflag [#allocation4], %s383
        %s385 = sand.u32 %s41, 1
        %s386 = smul.addr %s385, 512
        %s387 = scalar_lea.vmem [#allocation3], %s386
        %p388 = pneg %p54
        %p389 = pneg %p51
        %p390 = pneg %p75
        %p391 = pneg %p72
        %p392 = pneg %p96
        %p393 = pneg %p93
        %p394 = pneg %p117
        %p395 = pneg %p114
        %p396 = pneg %p138
        %p397 = pneg %p135
        %p398 = pneg %p159
        %p399 = pneg %p156
        %p400 = pneg %p180
        %p401 = pneg %p177
        %p402 = pneg %p201
        %p403 = pneg %p198
        %p404 = pneg %p222
        %p405 = pneg %p219
        %p406 = pneg %p248
        %p407 = pneg %p245
        %s408 = sand.u32 %s235, 1
        %s409 = scalar_lea.sflag [#allocation5], %s408
        %s410 = sand.u32 %s235, 1
        %s411 = smul.addr %s410, 8
        %s412 = scalar_lea.vmem [#allocation9], %s411
        %p413 = pneg %p274
        %p414 = pneg %p271
        %s415 = sand.u32 %s261, 1
        %s416 = scalar_lea.sflag [#allocation11], %s415
        %s417 = sand.u32 %s261, 1
        %s418 = smul.addr %s417, 128
        %s419 = scalar_lea.vmem [#allocation10], %s418
        %s420 = smul.u32 16, %s33
        %s421 = smul.u32 16, %s33
        %v423 = vld [vmem:[%s370] sm:$0xff]
        %v424 = vld [vmem:[%s370 + $0x8] sm:$0xff]
        %v425 = vld [vmem:[%s370 + $0x10] sm:$0xff]
        %v426 = vld [vmem:[%s370 + $0x18] sm:$0xff]
        %v427 = vld [vmem:[%s370 + $0x20] sm:$0xff]
        %v428 = vld [vmem:[%s370 + $0x28] sm:$0xff]
        %v429 = vld [vmem:[%s370 + $0x30] sm:$0xff]
        %v430 = vld [vmem:[%s370 + $0x38] sm:$0xff]
        %v431 = vld [vmem:[%s370 + $0x40] sm:$0xff]
        %v432 = vld [vmem:[%s370 + $0x48] sm:$0xff]
        %v433 = vld [vmem:[%s370 + $0x50] sm:$0xff]
        %v434 = vld [vmem:[%s370 + $0x58] sm:$0xff]
        %v435 = vld [vmem:[%s370 + $0x60] sm:$0xff]
        %v436 = vld [vmem:[%s370 + $0x68] sm:$0xff]
        %v437 = vld [vmem:[%s370 + $0x70] sm:$0xff]
        %v438 = vld [vmem:[%s370 + $0x78] sm:$0xff]
        %v439 = vld [vmem:[%s370 + $0x80] sm:$0xff]
        %v440 = vld [vmem:[%s370 + $0x88] sm:$0xff]
        %v441 = vld [vmem:[%s370 + $0x90] sm:$0xff]
        %v442 = vld [vmem:[%s370 + $0x98] sm:$0xff]
        %v443 = vld [vmem:[%s370 + $0xa0] sm:$0xff]
        %v444 = vld [vmem:[%s370 + $0xa8] sm:$0xff]
        %v445 = vld [vmem:[%s370 + $0xb0] sm:$0xff]
        %v446 = vld [vmem:[%s370 + $0xb8] sm:$0xff]
        %v447 = vld [vmem:[%s370 + $0xc0] sm:$0xff]
        %v448 = vld [vmem:[%s370 + $0xc8] sm:$0xff]
        %v449 = vld [vmem:[%s370 + $0xd0] sm:$0xff]
        %v450 = vld [vmem:[%s370 + $0xd8] sm:$0xff]
        %v451 = vld [vmem:[%s370 + $0xe0] sm:$0xff]
        %v452 = vld [vmem:[%s370 + $0xe8] sm:$0xff]
        %v453 = vld [vmem:[%s370 + $0xf0] sm:$0xff]
        %v454 = vld [vmem:[%s370 + $0xf8] sm:$0xff]
        %v455 = vld [vmem:[%s370 + $0x100] sm:$0xff]
        %v456 = vld [vmem:[%s370 + $0x108] sm:$0xff]
        %v457 = vld [vmem:[%s370 + $0x110] sm:$0xff]
        %v458 = vld [vmem:[%s370 + $0x118] sm:$0xff]
        %v459 = vld [vmem:[%s370 + $0x120] sm:$0xff]
        %v460 = vld [vmem:[%s370 + $0x128] sm:$0xff]
        %v461 = vld [vmem:[%s370 + $0x130] sm:$0xff]
        %v462 = vld [vmem:[%s370 + $0x138] sm:$0xff]
        %v463 = vld [vmem:[%s370 + $0x140] sm:$0xff]
        %v464 = vld [vmem:[%s370 + $0x148] sm:$0xff]
        %v465 = vld [vmem:[%s370 + $0x150] sm:$0xff]
        %v466 = vld [vmem:[%s370 + $0x158] sm:$0xff]
        %v467 = vld [vmem:[%s370 + $0x160] sm:$0xff]
        %v468 = vld [vmem:[%s370 + $0x168] sm:$0xff]
        %v469 = vld [vmem:[%s370 + $0x170] sm:$0xff]
        %v470 = vld [vmem:[%s370 + $0x178] sm:$0xff]
        %v471 = vld [vmem:[%s370 + $0x180] sm:$0xff]
        %v472 = vld [vmem:[%s370 + $0x188] sm:$0xff]
        %v473 = vld [vmem:[%s370 + $0x190] sm:$0xff]
        %v474 = vld [vmem:[%s370 + $0x198] sm:$0xff]
        %v475 = vld [vmem:[%s370 + $0x1a0] sm:$0xff]
        %v476 = vld [vmem:[%s370 + $0x1a8] sm:$0xff]
        %v477 = vld [vmem:[%s370 + $0x1b0] sm:$0xff]
        %v478 = vld [vmem:[%s370 + $0x1b8] sm:$0xff]
        %v479 = vld [vmem:[%s370 + $0x1c0] sm:$0xff]
        %v480 = vld [vmem:[%s370 + $0x1c8] sm:$0xff]
        %v481 = vld [vmem:[%s370 + $0x1d0] sm:$0xff]
        %v482 = vld [vmem:[%s370 + $0x1d8] sm:$0xff]
        %v483 = vld [vmem:[%s370 + $0x1e0] sm:$0xff]
        %v484 = vld [vmem:[%s370 + $0x1e8] sm:$0xff]
        %v485 = vld [vmem:[%s370 + $0x1f0] sm:$0xff]
        %v486 = vld [vmem:[%s370 + $0x1f8] sm:$0xff]
        %v487 = vpack.c.bf16 %v427, %v423
        %v488 = vpack.c.bf16 %v428, %v424
        %v489 = vpack.c.bf16 %v429, %v425
        %v490 = vpack.c.bf16 %v430, %v426
        %v491 = vpack.c.bf16 %v435, %v431
        %v492 = vpack.c.bf16 %v436, %v432
        %v493 = vpack.c.bf16 %v437, %v433
        %v494 = vpack.c.bf16 %v438, %v434
        %v495 = vpack.c.bf16 %v443, %v439
        %v496 = vpack.c.bf16 %v444, %v440
        %v497 = vpack.c.bf16 %v445, %v441
        %v498 = vpack.c.bf16 %v446, %v442
        %v499 = vpack.c.bf16 %v451, %v447
        %v500 = vpack.c.bf16 %v452, %v448
        %v501 = vpack.c.bf16 %v453, %v449
        %v502 = vpack.c.bf16 %v454, %v450
        %v503 = vpack.c.bf16 %v459, %v455
        %v504 = vpack.c.bf16 %v460, %v456
        %v505 = vpack.c.bf16 %v461, %v457
        %v506 = vpack.c.bf16 %v462, %v458
        %v507 = vpack.c.bf16 %v467, %v463
        %v508 = vpack.c.bf16 %v468, %v464
        %v509 = vpack.c.bf16 %v469, %v465
        %v510 = vpack.c.bf16 %v470, %v466
        %v511 = vpack.c.bf16 %v475, %v471
        %v512 = vpack.c.bf16 %v476, %v472
        %v513 = vpack.c.bf16 %v477, %v473
        %v514 = vpack.c.bf16 %v478, %v474
        %v515 = vpack.c.bf16 %v483, %v479
        %v516 = vpack.c.bf16 %v484, %v480
        %v517 = vpack.c.bf16 %v485, %v481
        %v518 = vpack.c.bf16 %v486, %v482
        %v519 = vld [vmem:[#allocation6] sm:$0xff]
        %v520 = vld [vmem:[#allocation6 + $0x8] sm:$0xff]
        %v521 = vld [vmem:[#allocation6 + $0x10] sm:$0xff]
        %v522 = vld [vmem:[#allocation6 + $0x18] sm:$0xff]
        %v523 = vld [vmem:[#allocation6 + $0x20] sm:$0xff]
        %v524 = vld [vmem:[#allocation6 + $0x28] sm:$0xff]
        %v525 = vld [vmem:[#allocation6 + $0x30] sm:$0xff]
        %v526 = vld [vmem:[#allocation6 + $0x38] sm:$0xff]
        %v527 = vld [vmem:[#allocation6 + $0x40] sm:$0xff]
        %v528 = vld [vmem:[#allocation6 + $0x48] sm:$0xff]
        %v529 = vld [vmem:[#allocation6 + $0x50] sm:$0xff]
        %v530 = vld [vmem:[#allocation6 + $0x58] sm:$0xff]
        %v531 = vld [vmem:[#allocation6 + $0x60] sm:$0xff]
        %v532 = vld [vmem:[#allocation6 + $0x68] sm:$0xff]
        %v533 = vld [vmem:[#allocation6 + $0x70] sm:$0xff]
        %v534 = vld [vmem:[#allocation6 + $0x78] sm:$0xff]
        %v535 = vld [vmem:[#allocation6 + $0x80] sm:$0xff]
        %v536 = vld [vmem:[#allocation6 + $0x88] sm:$0xff]
        %v537 = vld [vmem:[#allocation6 + $0x90] sm:$0xff]
        %v538 = vld [vmem:[#allocation6 + $0x98] sm:$0xff]
        %v539 = vld [vmem:[#allocation6 + $0xa0] sm:$0xff]
        %v540 = vld [vmem:[#allocation6 + $0xa8] sm:$0xff]
        %v541 = vld [vmem:[#allocation6 + $0xb0] sm:$0xff]
        %v542 = vld [vmem:[#allocation6 + $0xb8] sm:$0xff]
        %v543 = vld [vmem:[#allocation6 + $0xc0] sm:$0xff]
        %v544 = vld [vmem:[#allocation6 + $0xc8] sm:$0xff]
        %v545 = vld [vmem:[#allocation6 + $0xd0] sm:$0xff]
        %v546 = vld [vmem:[#allocation6 + $0xd8] sm:$0xff]
        %v547 = vld [vmem:[#allocation6 + $0xe0] sm:$0xff]
        %v548 = vld [vmem:[#allocation6 + $0xe8] sm:$0xff]
        %v549 = vld [vmem:[#allocation6 + $0xf0] sm:$0xff]
        %v550 = vld [vmem:[#allocation6 + $0xf8] sm:$0xff]
        %v551 = vld [vmem:[#allocation6 + $0x100] sm:$0xff]
        %v552 = vld [vmem:[#allocation6 + $0x108] sm:$0xff]
        %v553 = vld [vmem:[#allocation6 + $0x110] sm:$0xff]
        %v554 = vld [vmem:[#allocation6 + $0x118] sm:$0xff]
        %v555 = vld [vmem:[#allocation6 + $0x120] sm:$0xff]
        %v556 = vld [vmem:[#allocation6 + $0x128] sm:$0xff]
        %v557 = vld [vmem:[#allocation6 + $0x130] sm:$0xff]
        %v558 = vld [vmem:[#allocation6 + $0x138] sm:$0xff]
        %v559 = vld [vmem:[#allocation6 + $0x140] sm:$0xff]
        %v560 = vld [vmem:[#allocation6 + $0x148] sm:$0xff]
        %v561 = vld [vmem:[#allocation6 + $0x150] sm:$0xff]
        %v562 = vld [vmem:[#allocation6 + $0x158] sm:$0xff]
        %v563 = vld [vmem:[#allocation6 + $0x160] sm:$0xff]
        %v564 = vld [vmem:[#allocation6 + $0x168] sm:$0xff]
        %v565 = vld [vmem:[#allocation6 + $0x170] sm:$0xff]
        %v566 = vld [vmem:[#allocation6 + $0x178] sm:$0xff]
        %v567 = vld [vmem:[#allocation6 + $0x180] sm:$0xff]
        %v568 = vld [vmem:[#allocation6 + $0x188] sm:$0xff]
        %v569 = vld [vmem:[#allocation6 + $0x190] sm:$0xff]
        %v570 = vld [vmem:[#allocation6 + $0x198] sm:$0xff]
        %v571 = vld [vmem:[#allocation6 + $0x1a0] sm:$0xff]
        %v572 = vld [vmem:[#allocation6 + $0x1a8] sm:$0xff]
        %v573 = vld [vmem:[#allocation6 + $0x1b0] sm:$0xff]
        %v574 = vld [vmem:[#allocation6 + $0x1b8] sm:$0xff]
        %v575 = vld [vmem:[#allocation6 + $0x1c0] sm:$0xff]
        %v576 = vld [vmem:[#allocation6 + $0x1c8] sm:$0xff]
        %v577 = vld [vmem:[#allocation6 + $0x1d0] sm:$0xff]
        %v578 = vld [vmem:[#allocation6 + $0x1d8] sm:$0xff]
        %v579 = vld [vmem:[#allocation6 + $0x1e0] sm:$0xff]
        %v580 = vld [vmem:[#allocation6 + $0x1e8] sm:$0xff]
        %v581 = vld [vmem:[#allocation6 + $0x1f0] sm:$0xff]
        %v582 = vld [vmem:[#allocation6 + $0x1f8] sm:$0xff]
        %v583 = vld [vmem:[%s2] sm:$0x3]
        %v585 = vlaneseq
        %v586 = vshrl.u32 %v585, 7
        %v587 = vsub.s32 0, %v586
        %v588 = vrot.slane %v583, %v587
        %v589 = vlaneseq
        %v590 = vshrl.u32 %v589, 7
        %v591 = vsub.s32 1, %v590
        %v592 = vrot.slane %v583, %v591
        %v659 = vunpack.c.l.b16 %v519
        %v660 = vunpack.c.h.b16 %v519
        %v661 = vunpack.c.l.b16 %v520
        %v662 = vunpack.c.h.b16 %v520
        %v663 = vunpack.c.l.b16 %v521
        %v664 = vunpack.c.h.b16 %v521
        %v665 = vunpack.c.l.b16 %v522
        %v666 = vunpack.c.h.b16 %v522
        %v667 = vunpack.c.l.b16 %v523
        %v668 = vunpack.c.h.b16 %v523
        %v669 = vunpack.c.l.b16 %v524
        %v670 = vunpack.c.h.b16 %v524
        %v671 = vunpack.c.l.b16 %v525
        %v672 = vunpack.c.h.b16 %v525
        %v673 = vunpack.c.l.b16 %v526
        %v674 = vunpack.c.h.b16 %v526
        %v675 = vunpack.c.l.b16 %v527
        %v676 = vunpack.c.h.b16 %v527
        %v677 = vunpack.c.l.b16 %v528
        %v678 = vunpack.c.h.b16 %v528
        %v679 = vunpack.c.l.b16 %v529
        %v680 = vunpack.c.h.b16 %v529
        %v681 = vunpack.c.l.b16 %v530
        %v682 = vunpack.c.h.b16 %v530
        %v683 = vunpack.c.l.b16 %v531
        %v684 = vunpack.c.h.b16 %v531
        %v685 = vunpack.c.l.b16 %v532
        %v686 = vunpack.c.h.b16 %v532
        %v687 = vunpack.c.l.b16 %v533
        %v688 = vunpack.c.h.b16 %v533
        %v689 = vunpack.c.l.b16 %v534
        %v690 = vunpack.c.h.b16 %v534
        %v691 = vunpack.c.l.b16 %v535
        %v692 = vunpack.c.h.b16 %v535
        %v693 = vunpack.c.l.b16 %v536
        %v694 = vunpack.c.h.b16 %v536
        %v695 = vunpack.c.l.b16 %v537
        %v696 = vunpack.c.h.b16 %v537
        %v697 = vunpack.c.l.b16 %v538
        %v698 = vunpack.c.h.b16 %v538
        %v699 = vunpack.c.l.b16 %v539
        %v700 = vunpack.c.h.b16 %v539
        %v701 = vunpack.c.l.b16 %v540
        %v702 = vunpack.c.h.b16 %v540
        %v703 = vunpack.c.l.b16 %v541
        %v704 = vunpack.c.h.b16 %v541
        %v705 = vunpack.c.l.b16 %v542
        %v706 = vunpack.c.h.b16 %v542
        %v707 = vunpack.c.l.b16 %v543
        %v708 = vunpack.c.h.b16 %v543
        %v709 = vunpack.c.l.b16 %v544
        %v710 = vunpack.c.h.b16 %v544
        %v711 = vunpack.c.l.b16 %v545
        %v712 = vunpack.c.h.b16 %v545
        %v713 = vunpack.c.l.b16 %v546
        %v714 = vunpack.c.h.b16 %v546
        %v715 = vunpack.c.l.b16 %v547
        %v716 = vunpack.c.h.b16 %v547
        %v717 = vunpack.c.l.b16 %v548
        %v718 = vunpack.c.h.b16 %v548
        %v719 = vunpack.c.l.b16 %v549
        %v720 = vunpack.c.h.b16 %v549
        %v721 = vunpack.c.l.b16 %v550
        %v722 = vunpack.c.h.b16 %v550
        %v723 = vunpack.c.l.b16 %v551
        %v724 = vunpack.c.h.b16 %v551
        %v725 = vunpack.c.l.b16 %v552
        %v726 = vunpack.c.h.b16 %v552
        %v727 = vunpack.c.l.b16 %v553
        %v728 = vunpack.c.h.b16 %v553
        %v729 = vunpack.c.l.b16 %v554
        %v730 = vunpack.c.h.b16 %v554
        %v731 = vunpack.c.l.b16 %v555
        %v732 = vunpack.c.h.b16 %v555
        %v733 = vunpack.c.l.b16 %v556
        %v734 = vunpack.c.h.b16 %v556
        %v735 = vunpack.c.l.b16 %v557
        %v736 = vunpack.c.h.b16 %v557
        %v737 = vunpack.c.l.b16 %v558
        %v738 = vunpack.c.h.b16 %v558
        %v739 = vunpack.c.l.b16 %v559
        %v740 = vunpack.c.h.b16 %v559
        %v741 = vunpack.c.l.b16 %v560
        %v742 = vunpack.c.h.b16 %v560
        %v743 = vunpack.c.l.b16 %v561
        %v744 = vunpack.c.h.b16 %v561
        %v745 = vunpack.c.l.b16 %v562
        %v746 = vunpack.c.h.b16 %v562
        %v747 = vunpack.c.l.b16 %v563
        %v748 = vunpack.c.h.b16 %v563
        %v749 = vunpack.c.l.b16 %v564
        %v750 = vunpack.c.h.b16 %v564
        %v751 = vunpack.c.l.b16 %v565
        %v752 = vunpack.c.h.b16 %v565
        %v753 = vunpack.c.l.b16 %v566
        %v754 = vunpack.c.h.b16 %v566
        %v755 = vunpack.c.l.b16 %v567
        %v756 = vunpack.c.h.b16 %v567
        %v757 = vunpack.c.l.b16 %v568
        %v758 = vunpack.c.h.b16 %v568
        %v759 = vunpack.c.l.b16 %v569
        %v760 = vunpack.c.h.b16 %v569
        %v761 = vunpack.c.l.b16 %v570
        %v762 = vunpack.c.h.b16 %v570
        %v763 = vunpack.c.l.b16 %v571
        %v764 = vunpack.c.h.b16 %v571
        %v765 = vunpack.c.l.b16 %v572
        %v766 = vunpack.c.h.b16 %v572
        %v767 = vunpack.c.l.b16 %v573
        %v768 = vunpack.c.h.b16 %v573
        %v769 = vunpack.c.l.b16 %v574
        %v770 = vunpack.c.h.b16 %v574
        %v771 = vunpack.c.l.b16 %v575
        %v772 = vunpack.c.h.b16 %v575
        %v773 = vunpack.c.l.b16 %v576
        %v774 = vunpack.c.h.b16 %v576
        %v775 = vunpack.c.l.b16 %v577
        %v776 = vunpack.c.h.b16 %v577
        %v777 = vunpack.c.l.b16 %v578
        %v778 = vunpack.c.h.b16 %v578
        %v779 = vunpack.c.l.b16 %v579
        %v780 = vunpack.c.h.b16 %v579
        %v781 = vunpack.c.l.b16 %v580
        %v782 = vunpack.c.h.b16 %v580
        %v783 = vunpack.c.l.b16 %v581
        %v784 = vunpack.c.h.b16 %v581
        %v785 = vunpack.c.l.b16 %v582
        %v786 = vunpack.c.h.b16 %v582
        %v787 = vpack.c.b16 %v661, %v659
        %v788 = vpack.c.b16 %v662, %v660
        %v789 = vpack.c.b16 %v665, %v663
        %v790 = vpack.c.b16 %v666, %v664
        %v791 = vpack.c.b16 %v669, %v667
        %v792 = vpack.c.b16 %v670, %v668
        %v793 = vpack.c.b16 %v673, %v671
        %v794 = vpack.c.b16 %v674, %v672
        %v795 = vpack.c.b16 %v677, %v675
        %v796 = vpack.c.b16 %v678, %v676
        %v797 = vpack.c.b16 %v681, %v679
        %v798 = vpack.c.b16 %v682, %v680
        %v799 = vpack.c.b16 %v685, %v683
        %v800 = vpack.c.b16 %v686, %v684
        %v801 = vpack.c.b16 %v689, %v687
        %v802 = vpack.c.b16 %v690, %v688
        %v803 = vpack.c.b16 %v693, %v691
        %v804 = vpack.c.b16 %v694, %v692
        %v805 = vpack.c.b16 %v697, %v695
        %v806 = vpack.c.b16 %v698, %v696
        %v807 = vpack.c.b16 %v701, %v699
        %v808 = vpack.c.b16 %v702, %v700
        %v809 = vpack.c.b16 %v705, %v703
        %v810 = vpack.c.b16 %v706, %v704
        %v811 = vpack.c.b16 %v709, %v707
        %v812 = vpack.c.b16 %v710, %v708
        %v813 = vpack.c.b16 %v713, %v711
        %v814 = vpack.c.b16 %v714, %v712
        %v815 = vpack.c.b16 %v717, %v715
        %v816 = vpack.c.b16 %v718, %v716
        %v817 = vpack.c.b16 %v721, %v719
        %v818 = vpack.c.b16 %v722, %v720
        %v819 = vpack.c.b16 %v725, %v723
        %v820 = vpack.c.b16 %v726, %v724
        %v821 = vpack.c.b16 %v729, %v727
        %v822 = vpack.c.b16 %v730, %v728
        %v823 = vpack.c.b16 %v733, %v731
        %v824 = vpack.c.b16 %v734, %v732
        %v825 = vpack.c.b16 %v737, %v735
        %v826 = vpack.c.b16 %v738, %v736
        %v827 = vpack.c.b16 %v741, %v739
        %v828 = vpack.c.b16 %v742, %v740
        %v829 = vpack.c.b16 %v745, %v743
        %v830 = vpack.c.b16 %v746, %v744
        %v831 = vpack.c.b16 %v749, %v747
        %v832 = vpack.c.b16 %v750, %v748
        %v833 = vpack.c.b16 %v753, %v751
        %v834 = vpack.c.b16 %v754, %v752
        %v835 = vpack.c.b16 %v757, %v755
        %v836 = vpack.c.b16 %v758, %v756
        %v837 = vpack.c.b16 %v761, %v759
        %v838 = vpack.c.b16 %v762, %v760
        %v839 = vpack.c.b16 %v765, %v763
        %v840 = vpack.c.b16 %v766, %v764
        %v841 = vpack.c.b16 %v769, %v767
        %v842 = vpack.c.b16 %v770, %v768
        %v843 = vpack.c.b16 %v773, %v771
        %v844 = vpack.c.b16 %v774, %v772
        %v845 = vpack.c.b16 %v777, %v775
        %v846 = vpack.c.b16 %v778, %v776
        %v847 = vpack.c.b16 %v781, %v779
        %v848 = vpack.c.b16 %v782, %v780
        %v849 = vpack.c.b16 %v785, %v783
        %v850 = vpack.c.b16 %v786, %v784
        %915 = vmatprep.subr.bf16.mxu0 %v802
        %916 = vmatpush1.bf16.msra.mxu0 %v801
        %917 = vmatprep.subr.bf16.mxu0 %v800
        %918 = vmatpush1.bf16.msra.mxu0 %v799
        %919 = vmatprep.subr.bf16.mxu0 %v798
        %920 = vmatpush1.bf16.msra.mxu0 %v797
        %921 = vmatprep.subr.bf16.mxu0 %v796
        %922 = vmatpush1.bf16.msra.mxu0 %v795
        %923 = vmatprep.subr.bf16.mxu0 %v794
        %924 = vmatpush1.bf16.msra.mxu0 %v793
        %925 = vmatprep.subr.bf16.mxu0 %v792
        %926 = vmatpush1.bf16.msra.mxu0 %v791
        %927 = vmatprep.subr.bf16.mxu0 %v790
        %928 = vmatpush1.bf16.msra.mxu0 %v789
        %929 = vmatprep.subr.bf16.mxu0 %v788
        %930 = vmatpush1.bf16.msra.mxu0 %v787
        %931 = vmatprep.subr.bf16.mxu0 %v818
        %932 = vmatpush2.bf16.msra.mxu0 %v817
        %933 = vmatprep.subr.bf16.mxu0 %v816
        %934 = vmatpush2.bf16.msra.mxu0 %v815
        %935 = vmatprep.subr.bf16.mxu0 %v814
        %936 = vmatpush2.bf16.msra.mxu0 %v813
        %937 = vmatprep.subr.bf16.mxu0 %v812
        %938 = vmatpush2.bf16.msra.mxu0 %v811
        %939 = vmatprep.subr.bf16.mxu0 %v810
        %940 = vmatpush2.bf16.msra.mxu0 %v809
        %941 = vmatprep.subr.bf16.mxu0 %v808
        %942 = vmatpush2.bf16.msra.mxu0 %v807
        %943 = vmatprep.subr.bf16.mxu0 %v806
        %944 = vmatpush2.bf16.msra.mxu0 %v805
        %945 = vmatprep.subr.bf16.mxu0 %v804
        %946 = vmatpush2.bf16.msra.mxu0 %v803
        %947 = vmatprep.mubr.bf16.mxu0 %v488
        %948 = vmatmul.mubr.bf16.gmra.mxu0 %v487
        %v949 = vpop.f32.mrf.mxu0
        %v950 = vadd.f32 %v588, %v949
        %v951 = vpop.f32.mrf.mxu0
        %v952 = vadd.f32 %v592, %v951
        %v953 = vpop.f32.mrf.mxu0
        %v954 = vadd.f32 %v588, %v953
        %v955 = vpop.f32.mrf.mxu0
        %v956 = vadd.f32 %v592, %v955
        %957 = vmatprep.mubr.bf16.mxu0 %v492
        %958 = vmatmul.mubr.bf16.gmra.mxu0 %v491
        %v959 = vpop.f32.mrf.mxu0
        %v960 = vadd.f32 %v588, %v959
        %v961 = vpop.f32.mrf.mxu0
        %v962 = vadd.f32 %v592, %v961
        %v963 = vpop.f32.mrf.mxu0
        %v964 = vadd.f32 %v588, %v963
        %v965 = vpop.f32.mrf.mxu0
        %v966 = vadd.f32 %v592, %v965
        %967 = vmatprep.mubr.bf16.mxu0 %v496
        %968 = vmatmul.mubr.bf16.gmra.mxu0 %v495
        %v969 = vpop.f32.mrf.mxu0
        %v970 = vadd.f32 %v588, %v969
        %v971 = vpop.f32.mrf.mxu0
        %v972 = vadd.f32 %v592, %v971
        %v973 = vpop.f32.mrf.mxu0
        %v974 = vadd.f32 %v588, %v973
        %v975 = vpop.f32.mrf.mxu0
        %v976 = vadd.f32 %v592, %v975
        %977 = vmatprep.mubr.bf16.mxu0 %v500
        %978 = vmatmul.mubr.bf16.gmra.mxu0 %v499
        %v979 = vpop.f32.mrf.mxu0
        %v980 = vadd.f32 %v588, %v979
        %v981 = vpop.f32.mrf.mxu0
        %v982 = vadd.f32 %v592, %v981
        %v983 = vpop.f32.mrf.mxu0
        %v984 = vadd.f32 %v588, %v983
        %v985 = vpop.f32.mrf.mxu0
        %v986 = vadd.f32 %v592, %v985
        %987 = vmatprep.mubr.bf16.mxu0 %v504
        %988 = vmatmul.mubr.bf16.gmra.mxu0 %v503
        %v989 = vpop.f32.mrf.mxu0
        %v990 = vadd.f32 %v588, %v989
        %v991 = vpop.f32.mrf.mxu0
        %v992 = vadd.f32 %v592, %v991
        %v993 = vpop.f32.mrf.mxu0
        %v994 = vadd.f32 %v588, %v993
        %v995 = vpop.f32.mrf.mxu0
        %v996 = vadd.f32 %v592, %v995
        %997 = vmatprep.mubr.bf16.mxu0 %v508
        %998 = vmatmul.mubr.bf16.gmra.mxu0 %v507
        %v999 = vpop.f32.mrf.mxu0
        %v1000 = vadd.f32 %v588, %v999
        %v1001 = vpop.f32.mrf.mxu0
        %v1002 = vadd.f32 %v592, %v1001
        %v1003 = vpop.f32.mrf.mxu0
        %v1004 = vadd.f32 %v588, %v1003
        %v1005 = vpop.f32.mrf.mxu0
        %v1006 = vadd.f32 %v592, %v1005
        %1007 = vmatprep.mubr.bf16.mxu0 %v512
        %1008 = vmatmul.mubr.bf16.gmra.mxu0 %v511
        %v1009 = vpop.f32.mrf.mxu0
        %v1010 = vadd.f32 %v588, %v1009
        %v1011 = vpop.f32.mrf.mxu0
        %v1012 = vadd.f32 %v592, %v1011
        %v1013 = vpop.f32.mrf.mxu0
        %v1014 = vadd.f32 %v588, %v1013
        %v1015 = vpop.f32.mrf.mxu0
        %v1016 = vadd.f32 %v592, %v1015
        %1017 = vmatprep.mubr.bf16.mxu0 %v516
        %1018 = vmatmul.mubr.bf16.gmra.mxu0 %v515
        %v1019 = vpop.f32.mrf.mxu0
        %v1020 = vadd.f32 %v588, %v1019
        %v1021 = vpop.f32.mrf.mxu0
        %v1022 = vadd.f32 %v592, %v1021
        %v1023 = vpop.f32.mrf.mxu0
        %v1024 = vadd.f32 %v588, %v1023
        %v1025 = vpop.f32.mrf.mxu0
        %v1026 = vadd.f32 %v592, %v1025
        %1027 = vdwg.mxu0
        %1028 = vmatprep.subr.bf16.mxu0 %v834
        %1029 = vmatpush1.bf16.msra.mxu0 %v833
        %1030 = vmatprep.subr.bf16.mxu0 %v832
        %1031 = vmatpush1.bf16.msra.mxu0 %v831
        %1032 = vmatprep.subr.bf16.mxu0 %v830
        %1033 = vmatpush1.bf16.msra.mxu0 %v829
        %1034 = vmatprep.subr.bf16.mxu0 %v828
        %1035 = vmatpush1.bf16.msra.mxu0 %v827
        %1036 = vmatprep.subr.bf16.mxu0 %v826
        %1037 = vmatpush1.bf16.msra.mxu0 %v825
        %1038 = vmatprep.subr.bf16.mxu0 %v824
        %1039 = vmatpush1.bf16.msra.mxu0 %v823
        %1040 = vmatprep.subr.bf16.mxu0 %v822
        %1041 = vmatpush1.bf16.msra.mxu0 %v821
        %1042 = vmatprep.subr.bf16.mxu0 %v820
        %1043 = vmatpush1.bf16.msra.mxu0 %v819
        %1044 = vmatprep.subr.bf16.mxu0 %v850
        %1045 = vmatpush2.bf16.msra.mxu0 %v849
        %1046 = vmatprep.subr.bf16.mxu0 %v848
        %1047 = vmatpush2.bf16.msra.mxu0 %v847
        %1048 = vmatprep.subr.bf16.mxu0 %v846
        %1049 = vmatpush2.bf16.msra.mxu0 %v845
        %1050 = vmatprep.subr.bf16.mxu0 %v844
        %1051 = vmatpush2.bf16.msra.mxu0 %v843
        %1052 = vmatprep.subr.bf16.mxu0 %v842
        %1053 = vmatpush2.bf16.msra.mxu0 %v841
        %1054 = vmatprep.subr.bf16.mxu0 %v840
        %1055 = vmatpush2.bf16.msra.mxu0 %v839
        %1056 = vmatprep.subr.bf16.mxu0 %v838
        %1057 = vmatpush2.bf16.msra.mxu0 %v837
        %1058 = vmatprep.subr.bf16.mxu0 %v836
        %1059 = vmatpush2.bf16.msra.mxu0 %v835
        %1060 = vmatprep.mubr.bf16.mxu0 %v490
        %1061 = vmatmul.mubr.bf16.gmra.mxu0 %v489
        %v1062 = vpop.f32.mrf.mxu0
        %v1063 = vadd.f32 %v950, %v1062
        %v1064 = vpop.f32.mrf.mxu0
        %v1065 = vadd.f32 %v952, %v1064
        %v1066 = vpop.f32.mrf.mxu0
        %v1067 = vadd.f32 %v954, %v1066
        %v1068 = vpop.f32.mrf.mxu0
        %v1069 = vadd.f32 %v956, %v1068
        %1070 = vmatprep.mubr.bf16.mxu0 %v494
        %1071 = vmatmul.mubr.bf16.gmra.mxu0 %v493
        %v1072 = vpop.f32.mrf.mxu0
        %v1073 = vadd.f32 %v960, %v1072
        %v1074 = vpop.f32.mrf.mxu0
        %v1075 = vadd.f32 %v962, %v1074
        %v1076 = vpop.f32.mrf.mxu0
        %v1077 = vadd.f32 %v964, %v1076
        %v1078 = vpop.f32.mrf.mxu0
        %v1079 = vadd.f32 %v966, %v1078
        %1080 = vmatprep.mubr.bf16.mxu0 %v498
        %1081 = vmatmul.mubr.bf16.gmra.mxu0 %v497
        %v1082 = vpop.f32.mrf.mxu0
        %v1083 = vadd.f32 %v970, %v1082
        %v1084 = vpop.f32.mrf.mxu0
        %v1085 = vadd.f32 %v972, %v1084
        %v1086 = vpop.f32.mrf.mxu0
        %v1087 = vadd.f32 %v974, %v1086
        %v1088 = vpop.f32.mrf.mxu0
        %v1089 = vadd.f32 %v976, %v1088
        %1090 = vmatprep.mubr.bf16.mxu0 %v502
        %1091 = vmatmul.mubr.bf16.gmra.mxu0 %v501
        %v1092 = vpop.f32.mrf.mxu0
        %v1093 = vadd.f32 %v980, %v1092
        %v1094 = vpop.f32.mrf.mxu0
        %v1095 = vadd.f32 %v982, %v1094
        %v1096 = vpop.f32.mrf.mxu0
        %v1097 = vadd.f32 %v984, %v1096
        %v1098 = vpop.f32.mrf.mxu0
        %v1099 = vadd.f32 %v986, %v1098
        %1100 = vmatprep.mubr.bf16.mxu0 %v506
        %1101 = vmatmul.mubr.bf16.gmra.mxu0 %v505
        %v1102 = vpop.f32.mrf.mxu0
        %v1103 = vadd.f32 %v990, %v1102
        %v1104 = vpop.f32.mrf.mxu0
        %v1105 = vadd.f32 %v992, %v1104
        %v1106 = vpop.f32.mrf.mxu0
        %v1107 = vadd.f32 %v994, %v1106
        %v1108 = vpop.f32.mrf.mxu0
        %v1109 = vadd.f32 %v996, %v1108
        %1110 = vmatprep.mubr.bf16.mxu0 %v510
        %1111 = vmatmul.mubr.bf16.gmra.mxu0 %v509
        %v1112 = vpop.f32.mrf.mxu0
        %v1113 = vadd.f32 %v1000, %v1112
        %v1114 = vpop.f32.mrf.mxu0
        %v1115 = vadd.f32 %v1002, %v1114
        %v1116 = vpop.f32.mrf.mxu0
        %v1117 = vadd.f32 %v1004, %v1116
        %v1118 = vpop.f32.mrf.mxu0
        %v1119 = vadd.f32 %v1006, %v1118
        %1120 = vmatprep.mubr.bf16.mxu0 %v514
        %1121 = vmatmul.mubr.bf16.gmra.mxu0 %v513
        %v1122 = vpop.f32.mrf.mxu0
        %v1123 = vadd.f32 %v1010, %v1122
        %v1124 = vpop.f32.mrf.mxu0
        %v1125 = vadd.f32 %v1012, %v1124
        %v1126 = vpop.f32.mrf.mxu0
        %v1127 = vadd.f32 %v1014, %v1126
        %v1128 = vpop.f32.mrf.mxu0
        %v1129 = vadd.f32 %v1016, %v1128
        %1130 = vmatprep.mubr.bf16.mxu0 %v518
        %1131 = vmatmul.mubr.bf16.gmra.mxu0 %v517
        %v1132 = vpop.f32.mrf.mxu0
        %v1133 = vadd.f32 %v1020, %v1132
        %v1134 = vpop.f32.mrf.mxu0
        %v1135 = vadd.f32 %v1022, %v1134
        %v1136 = vpop.f32.mrf.mxu0
        %v1137 = vadd.f32 %v1024, %v1136
        %v1138 = vpop.f32.mrf.mxu0
        %v1139 = vadd.f32 %v1026, %v1138
        %1140 = vdwg.mxu0
        %v1141 = vmax.f32 %v1063, 0.0
        %v1142 = vmax.f32 %v1065, 0.0
        %v1143 = vmax.f32 %v1067, 0.0
        %v1144 = vmax.f32 %v1069, 0.0
        %v1145 = vmax.f32 %v1073, 0.0
        %v1146 = vmax.f32 %v1075, 0.0
        %v1147 = vmax.f32 %v1077, 0.0
        %v1148 = vmax.f32 %v1079, 0.0
        %v1149 = vmax.f32 %v1083, 0.0
        %v1150 = vmax.f32 %v1085, 0.0
        %v1151 = vmax.f32 %v1087, 0.0
        %v1152 = vmax.f32 %v1089, 0.0
        %v1153 = vmax.f32 %v1093, 0.0
        %v1154 = vmax.f32 %v1095, 0.0
        %v1155 = vmax.f32 %v1097, 0.0
        %v1156 = vmax.f32 %v1099, 0.0
        %v1157 = vmax.f32 %v1103, 0.0
        %v1158 = vmax.f32 %v1105, 0.0
        %v1159 = vmax.f32 %v1107, 0.0
        %v1160 = vmax.f32 %v1109, 0.0
        %v1161 = vmax.f32 %v1113, 0.0
        %v1162 = vmax.f32 %v1115, 0.0
        %v1163 = vmax.f32 %v1117, 0.0
        %v1164 = vmax.f32 %v1119, 0.0
        %v1165 = vmax.f32 %v1123, 0.0
        %v1166 = vmax.f32 %v1125, 0.0
        %v1167 = vmax.f32 %v1127, 0.0
        %v1168 = vmax.f32 %v1129, 0.0
        %v1169 = vmax.f32 %v1133, 0.0
        %v1170 = vmax.f32 %v1135, 0.0
        %v1171 = vmax.f32 %v1137, 0.0
        %v1172 = vmax.f32 %v1139, 0.0
        %v1173 = vpack.c.bf16 %v1143, %v1141
        %v1174 = vpack.c.bf16 %v1144, %v1142
        %v1175 = vpack.c.bf16 %v1147, %v1145
        %v1176 = vpack.c.bf16 %v1148, %v1146
        %v1177 = vpack.c.bf16 %v1151, %v1149
        %v1178 = vpack.c.bf16 %v1152, %v1150
        %v1179 = vpack.c.bf16 %v1155, %v1153
        %v1180 = vpack.c.bf16 %v1156, %v1154
        %v1181 = vpack.c.bf16 %v1159, %v1157
        %v1182 = vpack.c.bf16 %v1160, %v1158
        %v1183 = vpack.c.bf16 %v1163, %v1161
        %v1184 = vpack.c.bf16 %v1164, %v1162
        %v1185 = vpack.c.bf16 %v1167, %v1165
        %v1186 = vpack.c.bf16 %v1168, %v1166
        %v1187 = vpack.c.bf16 %v1171, %v1169
        %v1188 = vpack.c.bf16 %v1172, %v1170
        %v1189 = vld [vmem:[%s3] sm:$0xf]
        %v1190 = vld [vmem:[%s3 + $0x4] sm:$0xf]
        %v1191 = vld [vmem:[%s3 + $0x8] sm:$0xf]
        %v1192 = vld [vmem:[%s3 + $0xc] sm:$0xf]
        %v1193 = vld [vmem:[%s3 + $0x10] sm:$0xf]
        %v1194 = vld [vmem:[%s3 + $0x14] sm:$0xf]
        %v1195 = vld [vmem:[%s3 + $0x18] sm:$0xf]
        %v1196 = vld [vmem:[%s3 + $0x1c] sm:$0xf]
        %v1197 = vld [vmem:[%s3 + $0x20] sm:$0xf]
        %v1198 = vld [vmem:[%s3 + $0x24] sm:$0xf]
        %v1199 = vld [vmem:[%s3 + $0x28] sm:$0xf]
        %v1200 = vld [vmem:[%s3 + $0x2c] sm:$0xf]
        %v1201 = vld [vmem:[%s3 + $0x30] sm:$0xf]
        %v1202 = vld [vmem:[%s3 + $0x34] sm:$0xf]
        %v1203 = vld [vmem:[%s3 + $0x38] sm:$0xf]
        %v1204 = vld [vmem:[%s3 + $0x3c] sm:$0xf]
        %v1205 = vld [vmem:[%s3 + $0x40] sm:$0xf]
        %v1206 = vld [vmem:[%s3 + $0x44] sm:$0xf]
        %v1207 = vld [vmem:[%s3 + $0x48] sm:$0xf]
        %v1208 = vld [vmem:[%s3 + $0x4c] sm:$0xf]
        %v1209 = vld [vmem:[%s3 + $0x50] sm:$0xf]
        %v1210 = vld [vmem:[%s3 + $0x54] sm:$0xf]
        %v1211 = vld [vmem:[%s3 + $0x58] sm:$0xf]
        %v1212 = vld [vmem:[%s3 + $0x5c] sm:$0xf]
        %v1213 = vld [vmem:[%s3 + $0x60] sm:$0xf]
        %v1214 = vld [vmem:[%s3 + $0x64] sm:$0xf]
        %v1215 = vld [vmem:[%s3 + $0x68] sm:$0xf]
        %v1216 = vld [vmem:[%s3 + $0x6c] sm:$0xf]
        %v1217 = vld [vmem:[%s3 + $0x70] sm:$0xf]
        %v1218 = vld [vmem:[%s3 + $0x74] sm:$0xf]
        %v1219 = vld [vmem:[%s3 + $0x78] sm:$0xf]
        %v1220 = vld [vmem:[%s3 + $0x7c] sm:$0xf]
        %v1221 = vld [vmem:[%s4] sm:$0x1]
        %v1223 = vlaneseq
        %v1224 = vshrl.u32 %v1223, 7
        %v1225 = vsub.s32 0, %v1224
        %v1226 = vrot.slane %v1221, %v1225
        %v1260 = vunpack.c.l.b16 %v1189
        %v1261 = vunpack.c.l.b16 %v1190
        %v1262 = vunpack.c.l.b16 %v1191
        %v1263 = vunpack.c.l.b16 %v1192
        %v1264 = vunpack.c.l.b16 %v1193
        %v1265 = vunpack.c.l.b16 %v1194
        %v1266 = vunpack.c.l.b16 %v1195
        %v1267 = vunpack.c.l.b16 %v1196
        %v1268 = vunpack.c.l.b16 %v1197
        %v1269 = vunpack.c.l.b16 %v1198
        %v1270 = vunpack.c.l.b16 %v1199
        %v1271 = vunpack.c.l.b16 %v1200
        %v1272 = vunpack.c.l.b16 %v1201
        %v1273 = vunpack.c.l.b16 %v1202
        %v1274 = vunpack.c.l.b16 %v1203
        %v1275 = vunpack.c.l.b16 %v1204
        %v1276 = vunpack.c.l.b16 %v1205
        %v1277 = vunpack.c.l.b16 %v1206
        %v1278 = vunpack.c.l.b16 %v1207
        %v1279 = vunpack.c.l.b16 %v1208
        %v1280 = vunpack.c.l.b16 %v1209
        %v1281 = vunpack.c.l.b16 %v1210
        %v1282 = vunpack.c.l.b16 %v1211
        %v1283 = vunpack.c.l.b16 %v1212
        %v1284 = vunpack.c.l.b16 %v1213
        %v1285 = vunpack.c.l.b16 %v1214
        %v1286 = vunpack.c.l.b16 %v1215
        %v1287 = vunpack.c.l.b16 %v1216
        %v1288 = vunpack.c.l.b16 %v1217
        %v1289 = vunpack.c.l.b16 %v1218
        %v1290 = vunpack.c.l.b16 %v1219
        %v1291 = vunpack.c.l.b16 %v1220
        %v1292 = vpack.c.b16 %v1261, %v1260
        %v1293 = vpack.c.b16 %v1263, %v1262
        %v1294 = vpack.c.b16 %v1265, %v1264
        %v1295 = vpack.c.b16 %v1267, %v1266
        %v1296 = vpack.c.b16 %v1269, %v1268
        %v1297 = vpack.c.b16 %v1271, %v1270
        %v1298 = vpack.c.b16 %v1273, %v1272
        %v1299 = vpack.c.b16 %v1275, %v1274
        %v1300 = vpack.c.b16 %v1277, %v1276
        %v1301 = vpack.c.b16 %v1279, %v1278
        %v1302 = vpack.c.b16 %v1281, %v1280
        %v1303 = vpack.c.b16 %v1283, %v1282
        %v1304 = vpack.c.b16 %v1285, %v1284
        %v1305 = vpack.c.b16 %v1287, %v1286
        %v1306 = vpack.c.b16 %v1289, %v1288
        %v1307 = vpack.c.b16 %v1291, %v1290
        %1324 = vmatprep.subr.bf16.mxu0 0
        %1325 = vmatpush1.bf16.msra.mxu0 %v1299
        %1326 = vmatprep.subr.bf16.mxu0 0
        %1327 = vmatpush1.bf16.msra.mxu0 %v1298
        %1328 = vmatprep.subr.bf16.mxu0 0
        %1329 = vmatpush1.bf16.msra.mxu0 %v1297
        %1330 = vmatprep.subr.bf16.mxu0 0
        %1331 = vmatpush1.bf16.msra.mxu0 %v1296
        %1332 = vmatprep.subr.bf16.mxu0 0
        %1333 = vmatpush1.bf16.msra.mxu0 %v1295
        %1334 = vmatprep.subr.bf16.mxu0 0
        %1335 = vmatpush1.bf16.msra.mxu0 %v1294
        %1336 = vmatprep.subr.bf16.mxu0 0
        %1337 = vmatpush1.bf16.msra.mxu0 %v1293
        %1338 = vmatprep.subr.bf16.mxu0 0
        %1339 = vmatpush1.bf16.msra.mxu0 %v1292
        %1340 = vmatprep.subr.bf16.mxu0 0
        %1341 = vmatpush2.bf16.msra.mxu0 %v1307
        %1342 = vmatprep.subr.bf16.mxu0 0
        %1343 = vmatpush2.bf16.msra.mxu0 %v1306
        %1344 = vmatprep.subr.bf16.mxu0 0
        %1345 = vmatpush2.bf16.msra.mxu0 %v1305
        %1346 = vmatprep.subr.bf16.mxu0 0
        %1347 = vmatpush2.bf16.msra.mxu0 %v1304
        %1348 = vmatprep.subr.bf16.mxu0 0
        %1349 = vmatpush2.bf16.msra.mxu0 %v1303
        %1350 = vmatprep.subr.bf16.mxu0 0
        %1351 = vmatpush2.bf16.msra.mxu0 %v1302
        %1352 = vmatprep.subr.bf16.mxu0 0
        %1353 = vmatpush2.bf16.msra.mxu0 %v1301
        %1354 = vmatprep.subr.bf16.mxu0 0
        %1355 = vmatpush2.bf16.msra.mxu0 %v1300
        %1356 = vmatprep.mubr.bf16.mxu0 %v1174
        %1357 = vmatmul.mubr.bf16.gmra.mxu0 %v1173
        %v1358 = vpop.f32.mrf.mxu0
        %v1359 = vadd.f32 %v1226, %v1358
        %v1360 = vpop.f32.mrf.mxu0
        %v1361 = vpop.f32.mrf.mxu0
        %v1362 = vadd.f32 %v1226, %v1361
        %v1363 = vpop.f32.mrf.mxu0
        %1364 = vmatprep.mubr.bf16.mxu0 %v1176
        %1365 = vmatmul.mubr.bf16.gmra.mxu0 %v1175
        %v1366 = vpop.f32.mrf.mxu0
        %v1367 = vadd.f32 %v1226, %v1366
        %v1368 = vpop.f32.mrf.mxu0
        %v1369 = vpop.f32.mrf.mxu0
        %v1370 = vadd.f32 %v1226, %v1369
        %v1371 = vpop.f32.mrf.mxu0
        %1372 = vmatprep.mubr.bf16.mxu0 %v1178
        %1373 = vmatmul.mubr.bf16.gmra.mxu0 %v1177
        %v1374 = vpop.f32.mrf.mxu0
        %v1375 = vadd.f32 %v1226, %v1374
        %v1376 = vpop.f32.mrf.mxu0
        %v1377 = vpop.f32.mrf.mxu0
        %v1378 = vadd.f32 %v1226, %v1377
        %v1379 = vpop.f32.mrf.mxu0
        %1380 = vmatprep.mubr.bf16.mxu0 %v1180
        %1381 = vmatmul.mubr.bf16.gmra.mxu0 %v1179
        %v1382 = vpop.f32.mrf.mxu0
        %v1383 = vadd.f32 %v1226, %v1382
        %v1384 = vpop.f32.mrf.mxu0
        %v1385 = vpop.f32.mrf.mxu0
        %v1386 = vadd.f32 %v1226, %v1385
        %v1387 = vpop.f32.mrf.mxu0
        %1388 = vmatprep.mubr.bf16.mxu0 %v1182
        %1389 = vmatmul.mubr.bf16.gmra.mxu0 %v1181
        %v1390 = vpop.f32.mrf.mxu0
        %v1391 = vadd.f32 %v1226, %v1390
        %v1392 = vpop.f32.mrf.mxu0
        %v1393 = vpop.f32.mrf.mxu0
        %v1394 = vadd.f32 %v1226, %v1393
        %v1395 = vpop.f32.mrf.mxu0
        %1396 = vmatprep.mubr.bf16.mxu0 %v1184
        %1397 = vmatmul.mubr.bf16.gmra.mxu0 %v1183
        %v1398 = vpop.f32.mrf.mxu0
        %v1399 = vadd.f32 %v1226, %v1398
        %v1400 = vpop.f32.mrf.mxu0
        %v1401 = vpop.f32.mrf.mxu0
        %v1402 = vadd.f32 %v1226, %v1401
        %v1403 = vpop.f32.mrf.mxu0
        %1404 = vmatprep.mubr.bf16.mxu0 %v1186
        %1405 = vmatmul.mubr.bf16.gmra.mxu0 %v1185
        %v1406 = vpop.f32.mrf.mxu0
        %v1407 = vadd.f32 %v1226, %v1406
        %v1408 = vpop.f32.mrf.mxu0
        %v1409 = vpop.f32.mrf.mxu0
        %v1410 = vadd.f32 %v1226, %v1409
        %v1411 = vpop.f32.mrf.mxu0
        %1412 = vmatprep.mubr.bf16.mxu0 %v1188
        %1413 = vmatmul.mubr.bf16.gmra.mxu0 %v1187
        %v1414 = vpop.f32.mrf.mxu0
        %v1415 = vadd.f32 %v1226, %v1414
        %v1416 = vpop.f32.mrf.mxu0
        %v1417 = vpop.f32.mrf.mxu0
        %v1418 = vadd.f32 %v1226, %v1417
        %v1419 = vpop.f32.mrf.mxu0
        %1420 = vdwg.mxu0
        %v1421 = vpack.c.bf16 %v1362, %v1359
        %v1422 = vpack.c.bf16 %v1370, %v1367
        %v1423 = vpack.c.bf16 %v1378, %v1375
        %v1424 = vpack.c.bf16 %v1386, %v1383
        %v1425 = vpack.c.bf16 %v1394, %v1391
        %v1426 = vpack.c.bf16 %v1402, %v1399
        %v1427 = vpack.c.bf16 %v1410, %v1407
        %v1428 = vpack.c.bf16 %v1418, %v1415
        %v1429 = vld [vmem:[#allocation8] sm:$0xf]
        %v1430 = vld [vmem:[#allocation8 + $0x4] sm:$0xf]
        %v1431 = vld [vmem:[#allocation8 + $0x8] sm:$0xf]
        %v1432 = vld [vmem:[#allocation8 + $0xc] sm:$0xf]
        %v1433 = vld [vmem:[#allocation8 + $0x10] sm:$0xf]
        %v1434 = vld [vmem:[#allocation8 + $0x14] sm:$0xf]
        %v1435 = vld [vmem:[#allocation8 + $0x18] sm:$0xf]
        %v1436 = vld [vmem:[#allocation8 + $0x1c] sm:$0xf]
        %v1437 = vld [vmem:[#allocation8 + $0x20] sm:$0xf]
        %v1438 = vld [vmem:[#allocation8 + $0x24] sm:$0xf]
        %v1439 = vld [vmem:[#allocation8 + $0x28] sm:$0xf]
        %v1440 = vld [vmem:[#allocation8 + $0x2c] sm:$0xf]
        %v1441 = vld [vmem:[#allocation8 + $0x30] sm:$0xf]
        %v1442 = vld [vmem:[#allocation8 + $0x34] sm:$0xf]
        %v1443 = vld [vmem:[#allocation8 + $0x38] sm:$0xf]
        %v1444 = vld [vmem:[#allocation8 + $0x3c] sm:$0xf]
        %v1445 = vld [vmem:[%s6] sm:$0x1]
        %v1447 = vlaneseq
        %v1448 = vshrl.u32 %v1447, 7
        %v1449 = vsub.s32 0, %v1448
        %v1450 = vrot.slane %v1445, %v1449
        %v1468 = vunpack.c.l.b16 %v1429
        %v1469 = vunpack.c.l.b16 %v1430
        %v1470 = vunpack.c.l.b16 %v1431
        %v1471 = vunpack.c.l.b16 %v1432
        %v1472 = vunpack.c.l.b16 %v1433
        %v1473 = vunpack.c.l.b16 %v1434
        %v1474 = vunpack.c.l.b16 %v1435
        %v1475 = vunpack.c.l.b16 %v1436
        %v1476 = vunpack.c.l.b16 %v1437
        %v1477 = vunpack.c.l.b16 %v1438
        %v1478 = vunpack.c.l.b16 %v1439
        %v1479 = vunpack.c.l.b16 %v1440
        %v1480 = vunpack.c.l.b16 %v1441
        %v1481 = vunpack.c.l.b16 %v1442
        %v1482 = vunpack.c.l.b16 %v1443
        %v1483 = vunpack.c.l.b16 %v1444
        %v1484 = vpack.c.b16 %v1469, %v1468
        %v1485 = vpack.c.b16 %v1471, %v1470
        %v1486 = vpack.c.b16 %v1473, %v1472
        %v1487 = vpack.c.b16 %v1475, %v1474
        %v1488 = vpack.c.b16 %v1477, %v1476
        %v1489 = vpack.c.b16 %v1479, %v1478
        %v1490 = vpack.c.b16 %v1481, %v1480
        %v1491 = vpack.c.b16 %v1483, %v1482
        %1500 = vmatprep.subr.bf16.mxu0 0
        %1501 = vmatpush1.bf16.msra.mxu0 %v1491
        %1502 = vmatprep.subr.bf16.mxu0 0
        %1503 = vmatpush1.bf16.msra.mxu0 %v1490
        %1504 = vmatprep.subr.bf16.mxu0 0
        %1505 = vmatpush1.bf16.msra.mxu0 %v1489
        %1506 = vmatprep.subr.bf16.mxu0 0
        %1507 = vmatpush1.bf16.msra.mxu0 %v1488
        %1508 = vmatprep.subr.bf16.mxu0 0
        %1509 = vmatpush1.bf16.msra.mxu0 %v1487
        %1510 = vmatprep.subr.bf16.mxu0 0
        %1511 = vmatpush1.bf16.msra.mxu0 %v1486
        %1512 = vmatprep.subr.bf16.mxu0 0
        %1513 = vmatpush1.bf16.msra.mxu0 %v1485
        %1514 = vmatprep.subr.bf16.mxu0 0
        %1515 = vmatpush1.bf16.msra.mxu0 %v1484
        %1516 = vmatprep.subr.bf16.mxu0 0
        %1517 = vmatpush2.bf16.msra.mxu0 0
        %1518 = vmatprep.subr.bf16.mxu0 0
        %1519 = vmatpush2.bf16.msra.mxu0 0
        %1520 = vmatprep.subr.bf16.mxu0 0
        %1521 = vmatpush2.bf16.msra.mxu0 0
        %1522 = vmatprep.subr.bf16.mxu0 0
        %1523 = vmatpush2.bf16.msra.mxu0 0
        %1524 = vmatprep.subr.bf16.mxu0 0
        %1525 = vmatpush2.bf16.msra.mxu0 0
        %1526 = vmatprep.subr.bf16.mxu0 0
        %1527 = vmatpush2.bf16.msra.mxu0 0
        %1528 = vmatprep.subr.bf16.mxu0 0
        %1529 = vmatpush2.bf16.msra.mxu0 0
        %1530 = vmatprep.subr.bf16.mxu0 0
        %1531 = vmatpush2.bf16.msra.mxu0 0
        %1532 = vmatprep.mubr.bf16.mxu0 0
        %1533 = vmatmul.mubr.bf16.gmra.mxu0 %v1421
        %v1534 = vpop.f32.mrf.mxu0
        %v1535 = vadd.f32 %v1450, %v1534
        %v1536 = vpop.f32.mrf.mxu0
        %v1537 = vpop.f32.mrf.mxu0
        %v1538 = vadd.f32 %v1450, %v1537
        %v1539 = vpop.f32.mrf.mxu0
        %1540 = vmatprep.mubr.bf16.mxu0 0
        %1541 = vmatmul.mubr.bf16.gmra.mxu0 %v1422
        %v1542 = vpop.f32.mrf.mxu0
        %v1543 = vadd.f32 %v1450, %v1542
        %v1544 = vpop.f32.mrf.mxu0
        %v1545 = vpop.f32.mrf.mxu0
        %v1546 = vadd.f32 %v1450, %v1545
        %v1547 = vpop.f32.mrf.mxu0
        %1548 = vmatprep.mubr.bf16.mxu0 0
        %1549 = vmatmul.mubr.bf16.gmra.mxu0 %v1423
        %v1550 = vpop.f32.mrf.mxu0
        %v1551 = vadd.f32 %v1450, %v1550
        %v1552 = vpop.f32.mrf.mxu0
        %v1553 = vpop.f32.mrf.mxu0
        %v1554 = vadd.f32 %v1450, %v1553
        %v1555 = vpop.f32.mrf.mxu0
        %1556 = vmatprep.mubr.bf16.mxu0 0
        %1557 = vmatmul.mubr.bf16.gmra.mxu0 %v1424
        %v1558 = vpop.f32.mrf.mxu0
        %v1559 = vadd.f32 %v1450, %v1558
        %v1560 = vpop.f32.mrf.mxu0
        %v1561 = vpop.f32.mrf.mxu0
        %v1562 = vadd.f32 %v1450, %v1561
        %v1563 = vpop.f32.mrf.mxu0
        %1564 = vmatprep.mubr.bf16.mxu0 0
        %1565 = vmatmul.mubr.bf16.gmra.mxu0 %v1425
        %v1566 = vpop.f32.mrf.mxu0
        %v1567 = vadd.f32 %v1450, %v1566
        %v1568 = vpop.f32.mrf.mxu0
        %v1569 = vpop.f32.mrf.mxu0
        %v1570 = vadd.f32 %v1450, %v1569
        %v1571 = vpop.f32.mrf.mxu0
        %1572 = vmatprep.mubr.bf16.mxu0 0
        %1573 = vmatmul.mubr.bf16.gmra.mxu0 %v1426
        %v1574 = vpop.f32.mrf.mxu0
        %v1575 = vadd.f32 %v1450, %v1574
        %v1576 = vpop.f32.mrf.mxu0
        %v1577 = vpop.f32.mrf.mxu0
        %v1578 = vadd.f32 %v1450, %v1577
        %v1579 = vpop.f32.mrf.mxu0
        %1580 = vmatprep.mubr.bf16.mxu0 0
        %1581 = vmatmul.mubr.bf16.gmra.mxu0 %v1427
        %v1582 = vpop.f32.mrf.mxu0
        %v1583 = vadd.f32 %v1450, %v1582
        %v1584 = vpop.f32.mrf.mxu0
        %v1585 = vpop.f32.mrf.mxu0
        %v1586 = vadd.f32 %v1450, %v1585
        %v1587 = vpop.f32.mrf.mxu0
        %1588 = vmatprep.mubr.bf16.mxu0 0
        %1589 = vmatmul.mubr.bf16.gmra.mxu0 %v1428
        %v1590 = vpop.f32.mrf.mxu0
        %v1591 = vadd.f32 %v1450, %v1590
        %v1592 = vpop.f32.mrf.mxu0
        %v1593 = vpop.f32.mrf.mxu0
        %v1594 = vadd.f32 %v1450, %v1593
        %v1595 = vpop.f32.mrf.mxu0
        %1596 = vdwg.mxu0
        %v1597 = vmax.f32 %v1535, 0.0
        %v1598 = vmax.f32 %v1538, 0.0
        %v1599 = vmax.f32 %v1543, 0.0
        %v1600 = vmax.f32 %v1546, 0.0
        %v1601 = vmax.f32 %v1551, 0.0
        %v1602 = vmax.f32 %v1554, 0.0
        %v1603 = vmax.f32 %v1559, 0.0
        %v1604 = vmax.f32 %v1562, 0.0
        %v1605 = vmax.f32 %v1567, 0.0
        %v1606 = vmax.f32 %v1570, 0.0
        %v1607 = vmax.f32 %v1575, 0.0
        %v1608 = vmax.f32 %v1578, 0.0
        %v1609 = vmax.f32 %v1583, 0.0
        %v1610 = vmax.f32 %v1586, 0.0
        %v1611 = vmax.f32 %v1591, 0.0
        %v1612 = vmax.f32 %v1594, 0.0
        %1613 = vxpose.xlu0.b32.start [1/16] %v1597, 128
        %1614 = vxpose.xlu0.b32.cont [2/16] %v1598, 128
        %1615 = vxpose.xlu0.b32.cont [3/16] %v1599, 128
        %1616 = vxpose.xlu0.b32.cont [4/16] %v1600, 128
        %1617 = vxpose.xlu0.b32.cont [5/16] %v1601, 128
        %1618 = vxpose.xlu0.b32.cont [6/16] %v1602, 128
        %1619 = vxpose.xlu0.b32.cont [7/16] %v1603, 128
        %1620 = vxpose.xlu0.b32.cont [8/16] %v1604, 128
        %1621 = vxpose.xlu0.b32.cont [9/16] %v1605, 128
        %1622 = vxpose.xlu0.b32.cont [10/16] %v1606, 128
        %1623 = vxpose.xlu0.b32.cont [11/16] %v1607, 128
        %1624 = vxpose.xlu0.b32.cont [12/16] %v1608, 128
        %1625 = vxpose.xlu0.b32.cont [13/16] %v1609, 128
        %1626 = vxpose.xlu0.b32.cont [14/16] %v1610, 128
        %1627 = vxpose.xlu0.b32.cont [15/16] %v1611, 128
        %1628 = vxpose.xlu0.b32.end [16/16] %v1612, 128
        %v1629 = vpop.trf.xlu0
        %v1630 = vpop.trf.xlu0
        %v1631 = vpop.trf.xlu0
        %v1632 = vpop.trf.xlu0
        %v1633 = vpop.trf.xlu0
        %v1634 = vpop.trf.xlu0
        %v1635 = vpop.trf.xlu0
        %v1636 = vpop.trf.xlu0
        %v1637 = vpop.trf.xlu0
        %v1638 = vpop.trf.xlu0
        %v1639 = vpop.trf.xlu0
        %v1640 = vpop.trf.xlu0
        %v1641 = vpop.trf.xlu0
        %v1642 = vpop.trf.xlu0
        %v1643 = vpop.trf.xlu0
        %v1644 = vpop.trf.xlu0
        %v1645 = vld [vmem:[%s7] sm:$0xff]
        %v1646 = vld [vmem:[%s7 + $0x8] sm:$0xff]
        %v1647 = vld [vmem:[%s7 + $0x10] sm:$0xff]
        %v1648 = vld [vmem:[%s7 + $0x18] sm:$0xff]
        %v1649 = vld [vmem:[%s7 + $0x20] sm:$0xff]
        %v1650 = vld [vmem:[%s7 + $0x28] sm:$0xff]
        %v1651 = vld [vmem:[%s7 + $0x30] sm:$0xff]
        %v1652 = vld [vmem:[%s7 + $0x38] sm:$0xff]
        %v1653 = vld [vmem:[%s7 + $0x40] sm:$0xff]
        %v1654 = vld [vmem:[%s7 + $0x48] sm:$0xff]
        %v1655 = vld [vmem:[%s7 + $0x50] sm:$0xff]
        %v1656 = vld [vmem:[%s7 + $0x58] sm:$0xff]
        %v1657 = vld [vmem:[%s7 + $0x60] sm:$0xff]
        %v1658 = vld [vmem:[%s7 + $0x68] sm:$0xff]
        %v1659 = vld [vmem:[%s7 + $0x70] sm:$0xff]
        %v1660 = vld [vmem:[%s7 + $0x78] sm:$0xff]
        %1662 = vset.pattern.permute.xlu0 0
        %1663 = vperm.xlu0 %1662, %v1645
        %v1664 = vpop.permute.xlu0 %1663
        %1667 = vset.pattern.permute.xlu0 0
        %1668 = vperm.xlu0 %1667, %v1646
        %v1669 = vpop.permute.xlu0 %1668
        %1672 = vset.pattern.permute.xlu0 0
        %1673 = vperm.xlu0 %1672, %v1647
        %v1674 = vpop.permute.xlu0 %1673
        %1677 = vset.pattern.permute.xlu0 0
        %1678 = vperm.xlu0 %1677, %v1648
        %v1679 = vpop.permute.xlu0 %1678
        %1682 = vset.pattern.permute.xlu0 0
        %1683 = vperm.xlu0 %1682, %v1649
        %v1684 = vpop.permute.xlu0 %1683
        %1687 = vset.pattern.permute.xlu0 0
        %1688 = vperm.xlu0 %1687, %v1650
        %v1689 = vpop.permute.xlu0 %1688
        %1692 = vset.pattern.permute.xlu0 0
        %1693 = vperm.xlu0 %1692, %v1651
        %v1694 = vpop.permute.xlu0 %1693
        %1697 = vset.pattern.permute.xlu0 0
        %1698 = vperm.xlu0 %1697, %v1652
        %v1699 = vpop.permute.xlu0 %1698
        %1702 = vset.pattern.permute.xlu0 0
        %1703 = vperm.xlu0 %1702, %v1653
        %v1704 = vpop.permute.xlu0 %1703
        %1707 = vset.pattern.permute.xlu0 0
        %1708 = vperm.xlu0 %1707, %v1654
        %v1709 = vpop.permute.xlu0 %1708
        %1712 = vset.pattern.permute.xlu0 0
        %1713 = vperm.xlu0 %1712, %v1655
        %v1714 = vpop.permute.xlu0 %1713
        %1717 = vset.pattern.permute.xlu0 0
        %1718 = vperm.xlu0 %1717, %v1656
        %v1719 = vpop.permute.xlu0 %1718
        %1722 = vset.pattern.permute.xlu0 0
        %1723 = vperm.xlu0 %1722, %v1657
        %v1724 = vpop.permute.xlu0 %1723
        %1727 = vset.pattern.permute.xlu0 0
        %1728 = vperm.xlu0 %1727, %v1658
        %v1729 = vpop.permute.xlu0 %1728
        %1732 = vset.pattern.permute.xlu0 0
        %1733 = vperm.xlu0 %1732, %v1659
        %v1734 = vpop.permute.xlu0 %1733
        %1737 = vset.pattern.permute.xlu0 0
        %1738 = vperm.xlu0 %1737, %v1660
        %v1739 = vpop.permute.xlu0 %1738
        %v1741 = vmul.f32 %v1629, %v1664
        %v1742 = vmul.f32 %v1630, %v1669
        %v1743 = vmul.f32 %v1631, %v1674
        %v1744 = vmul.f32 %v1632, %v1679
        %v1745 = vmul.f32 %v1633, %v1684
        %v1746 = vmul.f32 %v1634, %v1689
        %v1747 = vmul.f32 %v1635, %v1694
        %v1748 = vmul.f32 %v1636, %v1699
        %v1749 = vmul.f32 %v1637, %v1704
        %v1750 = vmul.f32 %v1638, %v1709
        %v1751 = vmul.f32 %v1639, %v1714
        %v1752 = vmul.f32 %v1640, %v1719
        %v1753 = vmul.f32 %v1641, %v1724
        %v1754 = vmul.f32 %v1642, %v1729
        %v1755 = vmul.f32 %v1643, %v1734
        %v1756 = vmul.f32 %v1644, %v1739
        %v1757 = vadd.f32 %v1741, %v1742
        %v1758 = vadd.f32 %v1757, %v1743
        %v1759 = vadd.f32 %v1758, %v1744
        %v1760 = vadd.f32 %v1759, %v1745
        %v1761 = vadd.f32 %v1760, %v1746
        %v1762 = vadd.f32 %v1761, %v1747
        %v1763 = vadd.f32 %v1762, %v1748
        %v1764 = vadd.f32 %v1763, %v1749
        %v1765 = vadd.f32 %v1764, %v1750
        %v1766 = vadd.f32 %v1765, %v1751
        %v1767 = vadd.f32 %v1766, %v1752
        %v1768 = vadd.f32 %v1767, %v1753
        %v1769 = vadd.f32 %v1768, %v1754
        %v1770 = vadd.f32 %v1769, %v1755
        %v1771 = vadd.f32 %v1770, %v1756
        %v1772 = vrot.slane %v1771, 4
        %v1773 = vadd.f32 %v1771, %v1772
        %v1774 = vrot.slane %v1773, 2
        %v1775 = vadd.f32 %v1773, %v1774
        %v1776 = vrot.slane %v1775, 1
        %v1777 = vadd.f32 %v1775, %v1776
        %s1778 = sld [smem:[#allocation2]]
        %v1779 = vstv %s1778
        %v1780 = vadd.f32 %v1777, %v1779
        %1781 = vst [vmem:[%s412] sm:$0xff] %v1780
        %1782 = vst [vmem:[%s419] sm:$0xff] %v1359
        %1783 = vst [vmem:[%s419 + $0x8] sm:$0xff] %v1362
        %1784 = vst [vmem:[%s419 + $0x10] sm:$0xff] %v1367
        %1785 = vst [vmem:[%s419 + $0x18] sm:$0xff] %v1370
        %1786 = vst [vmem:[%s419 + $0x20] sm:$0xff] %v1375
        %1787 = vst [vmem:[%s419 + $0x28] sm:$0xff] %v1378
        %1788 = vst [vmem:[%s419 + $0x30] sm:$0xff] %v1383
        %1789 = vst [vmem:[%s419 + $0x38] sm:$0xff] %v1386
        %1790 = vst [vmem:[%s419 + $0x40] sm:$0xff] %v1391
        %1791 = vst [vmem:[%s419 + $0x48] sm:$0xff] %v1394
        %1792 = vst [vmem:[%s419 + $0x50] sm:$0xff] %v1399
        %1793 = vst [vmem:[%s419 + $0x58] sm:$0xff] %v1402
        %1794 = vst [vmem:[%s419 + $0x60] sm:$0xff] %v1407
        %1795 = vst [vmem:[%s419 + $0x68] sm:$0xff] %v1410
        %1796 = vst [vmem:[%s419 + $0x70] sm:$0xff] %v1415
        %1797 = vst [vmem:[%s419 + $0x78] sm:$0xff] %v1418
        %s1798 = sand.u32 %s235, 1
        %s1799 = scalar_lea.sflag [#allocation5], %s1798
        %s1800 = sand.u32 %s235, 1
        %s1801 = smul.addr %s1800, 8
        %s1802 = scalar_lea.vmem [#allocation9], %s1801
        %s1803 = sand.u32 %s261, 1
        %s1804 = scalar_lea.sflag [#allocation11], %s1803
        %s1805 = sand.u32 %s261, 1
        %s1806 = smul.addr %s1805, 128
        %s1807 = scalar_lea.vmem [#allocation10], %s1806
        // Predicated region
        $region69: #{tpu_custom_call.1} parent=55 // pred_check
          %p1808 = pneg %p245
        $region70: #{tpu_custom_call.1} parent=55 // pred_check_branch
          %1810 = sbr.rel (%p1808) target = $region72
        $region71: #{tpu_custom_call.1} parent=55 // pred_region
          %s1812 = ssub.s32 128, 128
          %1813 = vsyncadd %s1799, %s1812
          %s1814 = smul.addr %s33, 128
          %s1815 = scalar_lea.hbm %s9, %s1814
          %s1817 = sshll.u32 %s1802, 4
          %s1818 = int_to_ptr.vmem [resolvable:$true] %s1817
          %1820 = dma.vmem_to_hbm [thread:$0]  %s1818, 128, %s1815, %s1799
        $region72: #{tpu_custom_call.1} parent=55 // pred_fallthru
          _
        // Predicated region
        $region73: #{tpu_custom_call.1} parent=55 // pred_check
          %p1821 = pneg %p271
        $region74: #{tpu_custom_call.1} parent=55 // pred_check_branch
          %1823 = sbr.rel (%p1821) target = $region76
        $region75: #{tpu_custom_call.1} parent=55 // pred_region
          %s1824 = smul.u32 16, %s33
          %s1826 = ssub.s32 2048, 2048
          %1827 = vsyncadd %s1804, %s1826
          %s1828 = smul.addr %s1824, 128
          %s1829 = scalar_lea.hbm %s10, %s1828
          %s1830 = sshll.u32 %s1807, 4
          %s1831 = int_to_ptr.vmem [resolvable:$true] %s1830
          %1836 = dma.vmem_to_hbm [thread:$0]  %s1831, 2048, %s1829, %s1804, 128, 128, 8
        $region76: #{tpu_custom_call.1} parent=55 // pred_fallthru
          _
      $region56: #{tpu_custom_call.1} parent=5 // pred_fallthru
        _
      %p1837 = scmp.le.s32.totalorder 2, %s28
      // Predicated region
      $region77: #{tpu_custom_call.1} parent=5 // pred_check
        %p1838 = pneg %p1837
      $region78: #{tpu_custom_call.1} parent=5 // pred_check_branch
        %1840 = sbr.rel (%p1838) target = $region80
      $region79: #{tpu_custom_call.1} parent=5 // pred_region
        %s1841 = ssub.s32 %s28, 2
        // Predicated region
        $region81: #{tpu_custom_call.1} parent=79 // pred_check
          %p1842 = pneg %p251
        $region82: #{tpu_custom_call.1} parent=79 // pred_check_branch
          %1844 = sbr.rel (%p1842) target = $region84
        $region83: #{tpu_custom_call.1} parent=79 // pred_region
          %s1845 = sand.u32 %s236, 1
          %s1846 = scalar_lea.sflag [#allocation5], %s1845
          %s1847 = sand.u32 %s236, 1
          %s1848 = smul.addr %s1847, 8
          %s1849 = scalar_lea.vmem [#allocation9], %s1848
          %1850 = dma.done %s1846, 128
        $region84: #{tpu_custom_call.1} parent=79 // pred_fallthru
          _
        // Predicated region
        $region85: #{tpu_custom_call.1} parent=79 // pred_check
          %p1851 = pneg %p277
        $region86: #{tpu_custom_call.1} parent=79 // pred_check_branch
          %1853 = sbr.rel (%p1851) target = $region88
        $region87: #{tpu_custom_call.1} parent=79 // pred_region
          %s1854 = sand.u32 %s262, 1
          %s1855 = scalar_lea.sflag [#allocation11], %s1854
          %s1856 = sand.u32 %s262, 1
          %s1857 = smul.addr %s1856, 128
          %s1858 = scalar_lea.vmem [#allocation10], %s1857
          %1859 = dma.done %s1855, 2048
        $region88: #{tpu_custom_call.1} parent=79 // pred_fallthru
          _
      $region80: #{tpu_custom_call.1} parent=5 // pred_fallthru
        _
    $region6: #{tpu_custom_call.1} parent=1 // loop_footer
      %s32 = sadd.s32 1, %s28
    $region7: #{tpu_custom_call.1} parent=1 // loop_footer_branch
      %27 = sbr.rel target = $region3
    $region8: #{tpu_custom_call.1} parent=1 // loop_exit
      _
    %1860 = vsyncpa [#allocation4], 1
    %s1861 = scalar_lea.sflag [#allocation4], 1
    %1862 = vsyncpa %s1861, 1
    %1863 = vsyncpa [#allocation7], 1
    %1864 = vsyncpa [#allocation5], 1
    %s1865 = scalar_lea.sflag [#allocation5], 1
    %1866 = vsyncpa %s1865, 1
    %1867 = vsyncpa [#allocation11], 1
    %s1868 = scalar_lea.sflag [#allocation11], 1
    %1869 = vsyncpa %s1868, 1

</llo_original>
